<compile_context>
chip_gen: v5e
topology: v5e:2x2
jax: 0.10.0
libtpu: 0.0.40
codegen_flags: <defaults>
</compile_context>

<pallas_src>
import functools

import jax
import jax.numpy as jnp
from jax.experimental import pallas as pl
from jax.experimental.pallas import tpu as pltpu

FILTERING_SIZE = 50   # fixed by the module
HALO = 128            # right-halo width; must be >= FILTERING_SIZE - 1 and a multiple of 128


def _round_up(x, m):
    return ((x + m - 1) // m) * m


def _envelope_detector_kernel(xm_ref, xh_ref, wb_ref, o_ref, *, cpc, filt_k, l_chunk):
    # xm_ref: (TR, l_block)         signal rows for this (row-block, length-block)
    # xh_ref: (TR, HALO)            the HALO samples immediately after this length block
    # wb_ref: (1, cpc*K, TR, 128)   lane-replicated taps: wb[0, j*K+k, r, :] = w[row r, slot j, tap k]
    # o_ref : (cpc, TR, l_block)    slot j of row r -> output channel (r % C_in) * cpc + j
    TR = xm_ref.shape[0]
    l_block = o_ref.shape[2]
    K = filt_k

    for t0 in range(0, l_block, l_chunk):              # static chunking keeps accumulators in vregs
        tc = min(l_chunk, l_block - t0)                # multiple of 128 by construction
        ncol = tc // 128
        if t0 + tc + HALO <= l_block:                  # chunk + right halo lives inside this block
            xc = xm_ref[:, t0:t0 + tc + HALO].astype(jnp.float32)
        else:                                          # final chunk of the block: splice in the halo
            xc = jnp.concatenate([xm_ref[:, t0:l_block], xh_ref[:, :]],
                                 axis=1).astype(jnp.float32)

        # per (output slot, 128-lane column) accumulators -> cpc*ncol independent VALU chains
        accs = [[jnp.zeros((TR, 128), jnp.float32) for _ in range(ncol)] for _ in range(cpc)]
        for k in range(K):                             # unrolled tap loop, k OUTER
            # one misaligned in-register slice per column, shared by all cpc output slots
            xk = [xc[:, k + c * 128:k + (c + 1) * 128] for c in range(ncol)]
            for j in range(cpc):                       # j inner: reuse xk
                # aligned (TR,128) load of the lane-replicated tap: no XLU broadcast needed
                w_jk = wb_ref[0, j * K + k].astype(jnp.float32)
                for c in range(ncol):
                    # cross-correlation (PyTorch Conv1d): y[r,j,t] = sum_k x[r,t+k] * w[r,j,k]
                    accs[j][c] = accs[j][c] + xk[c] * w_jk
        for j in range(cpc):
            for c in range(ncol):                      # unmasked, lane-dense, 128-aligned stores
                o_ref[j, :, t0 + c * 128:t0 + (c + 1) * 128] = (
                    jnp.maximum(accs[j][c], 0.0).astype(o_ref.dtype))


def envelope_detector_forward(x, weight, channels_per_channel, *, row_block=8,
                              l_block=4096, l_chunk=1024):
    """x: (N, C_in, L) float32; weight: (C_out, 1, K) with C_out = C_in * channels_per_channel."""
    N, C_in, L = x.shape
    cpc = channels_per_channel
    C_out = C_in * cpc
    K = weight.shape[-1]
    assert weight.shape == (C_out, 1, K)
    assert K <= HALO + 1
    assert L >= K
    assert row_block % 8 == 0, "row block must keep the sublane dim a multiple of 8"
    assert l_block % 128 == 0 and l_chunk % 128 == 0, "length tiles must be 128-lane aligned"

    L_out = L - K + 1

    # length tiling: grid blocks of l_block outputs, in-kernel register chunks of l_chunk
    l_block = min(l_block, _round_up(L_out, 128))
    l_chunk = min(l_chunk, l_block)
    L_pad = _round_up(L_out, l_block)
    num_t = L_pad // l_block

    # row tiling: (batch, channel) flattened; pad rows so TR is a multiple of 8 for any C_in
    TR = row_block
    R = N * C_in
    R_pad = _round_up(R, TR)
    num_r = R_pad // TR

    # pad rows + length once (halo spec reads [L_pad, L_pad+HALO)); padded tails are sliced off below
    x_rows = x.reshape(R, L)
    x_p = jnp.pad(x_rows, ((0, R_pad - R), (0, L_pad + HALO - L)))

    # lane-replicated taps: wb[i, j*K + k, r, :] = weight[((i*TR + r) % C_in) * cpc + j, 0, k]
    w3 = weight.reshape(C_in, cpc, K).astype(jnp.float32)
    row_ch = jnp.arange(R_pad) % C_in
    w_rows = w3[row_ch]                                            # (R_pad, cpc, K)
    wb = w_rows.reshape(num_r, TR, cpc * K).transpose(0, 2, 1)[..., None]
    wb = jnp.broadcast_to(wb, (num_r, cpc * K, TR, 128))

    halo_step = l_block // HALO        # halo column-block index per length block

    out = pl.pallas_call(
        functools.partial(_envelope_detector_kernel, cpc=cpc, filt_k=K, l_chunk=l_chunk),
        out_shape=jax.ShapeDtypeStruct((cpc, R_pad, L_pad), x.dtype),
        grid_spec=pltpu.PrefetchScalarGridSpec(
            num_scalar_prefetch=0,
            grid=(num_r, num_t),
            in_specs=[
                pl.BlockSpec((TR, l_block), lambda i, t: (i, t)),                  # signal block
                pl.BlockSpec((TR, HALO), lambda i, t: (i, (t + 1) * halo_step)),   # right halo
                pl.BlockSpec((1, cpc * K, TR, 128), lambda i, t: (i, 0, 0, 0)),    # taps (resident per i)
            ],
            out_specs=pl.BlockSpec((cpc, TR, l_block), lambda i, t: (0, i, t)),
        ),
        compiler_params=pltpu.CompilerParams(
            dimension_semantics=("parallel", "parallel"),
        ),
    )(x_p, x_p, wb)

    # (cpc, R_pad, L_pad) -> (N, C_out, L_out); channel order c*cpc + j matches PyTorch grouped
    # conv. The transpose is fused with the unavoidable un-padding slice.
    out = out[:, :R, :L_out].reshape(cpc, N, C_in, L_out)
    return out.transpose(1, 2, 0, 3).reshape(N, C_out, L_out)


def _reference_forward(x, weight, channels_per_channel):
    """Plain-JAX reference (grouped conv1d + relu), exact f32 accumulation."""
    N, C_in, L = x.shape
    C_out = C_in * channels_per_channel
    K = weight.shape[-1]
    L_out = L - K + 1
    x_exp = jnp.repeat(x, channels_per_channel, axis=1)            # (N, C_out, L)
    w2d = weight.reshape(C_out, K)
    idx = jnp.arange(L_out)[:, None] + jnp.arange(K)[None, :]
    windows = x_exp[:, :, idx]                                     # (N, C_out, L_out, K)
    y = jnp.sum(windows * w2d[None, :, None, :], axis=-1)
    return jnp.maximum(y, 0.0)


if __name__ == "__main__":
    # Small shapes consistent with the module: batch=2, in_channels=4, channels_per_channel=2,
    # sequence length 128 (must be >= FILTERING_SIZE=50).
    batch = 2
    in_channels = 4
    channels_per_channel = 2
    seq_len = 128
    out_channels = in_channels * channels_per_channel

    key = jax.random.PRNGKey(0)
    kx, kw = jax.random.split(key)
    x = jax.random.normal(kx, (batch, in_channels, seq_len), dtype=jnp.float32)
    # conv_filtering weight: (OUTPUT_CHANNELS, 1, FILTERING_SIZE)
    weight = jax.random.normal(kw, (out_channels, 1, FILTERING_SIZE), dtype=jnp.float32) * 0.05

    y = envelope_detector_forward(x, weight, channels_per_channel)
    y = jax.block_until_ready(y)

    y_ref = _reference_forward(x, weight, channels_per_channel)
    assert y.shape == (batch, out_channels, seq_len - FILTERING_SIZE + 1)
    assert jnp.allclose(y, y_ref, atol=1e-4, rtol=1e-4)

    print("KERNEL_OK")
</pallas_src>

<mosaic_0001>
module attributes {stable_mosaic.version = 11 : i64} {
  func.func @_envelope_detector_kernel(%arg0: i32, %arg1: i32, %arg2: memref<8x128xf32, #tpu.memory_space<vmem>>, %arg3: memref<8x128xf32, #tpu.memory_space<vmem>>, %arg4: memref<1x100x8x128xf32, #tpu.memory_space<vmem>>, %arg5: memref<2x8x128xf32, #tpu.memory_space<vmem>>) attributes {dimension_semantics = [#tpu.dimension_semantics<parallel>, #tpu.dimension_semantics<parallel>], iteration_bounds = array<i64: 1, 1>, scalar_prefetch = 0 : i64, scratch_operands = 0 : i64, tpu.core_type = #tpu.core_type<tc>, window_params = [{transform_indices = @transform_0, window_bounds = array<i64: 8, 128>}, {transform_indices = @transform_1, window_bounds = array<i64: 8, 128>}, {transform_indices = @transform_2, window_bounds = array<i64: 1, 100, 8, 128>}, {transform_indices = @transform_3, window_bounds = array<i64: 2, 8, 128>}]} {
    %c0 = arith.constant 0 : index
    %c0_0 = arith.constant 0 : index
    %0 = vector.load %arg2[%c0, %c0_0] : memref<8x128xf32, #tpu.memory_space<vmem>>, vector<8x128xf32>
    %c0_1 = arith.constant 0 : index
    %c0_2 = arith.constant 0 : index
    %1 = vector.load %arg3[%c0_1, %c0_2] : memref<8x128xf32, #tpu.memory_space<vmem>>, vector<8x128xf32>
    %2 = tpu.concatenate %0, %1 in 1 : vector<8x128xf32>, vector<8x128xf32> -> vector<8x256xf32>
    %cst = arith.constant 0.000000e+00 : f32
    %3 = vector.broadcast %cst : f32 to vector<8x128xf32>
    %cst_3 = arith.constant 0.000000e+00 : f32
    %4 = vector.broadcast %cst_3 : f32 to vector<8x128xf32>
    %5 = vector.extract_strided_slice %2 {offsets = [0, 0], sizes = [8, 128], strides = [1, 1]} : vector<8x256xf32> to vector<8x128xf32>
    %c0_4 = arith.constant 0 : index
    %c0_5 = arith.constant 0 : index
    %c0_6 = arith.constant 0 : index
    %c0_7 = arith.constant 0 : index
    %6 = vector.load %arg4[%c0_4, %c0_5, %c0_6, %c0_7] : memref<1x100x8x128xf32, #tpu.memory_space<vmem>>, vector<1x1x8x128xf32>
    %7 = vector.shape_cast %6 : vector<1x1x8x128xf32> to vector<8x128xf32>
    %8 = arith.mulf %5, %7 : vector<8x128xf32>
    %9 = arith.addf %3, %8 : vector<8x128xf32>
    %c0_8 = arith.constant 0 : index
    %c50 = arith.constant 50 : index
    %c0_9 = arith.constant 0 : index
    %c0_10 = arith.constant 0 : index
    %10 = vector.load %arg4[%c0_8, %c50, %c0_9, %c0_10] : memref<1x100x8x128xf32, #tpu.memory_space<vmem>>, vector<1x1x8x128xf32>
    %11 = vector.shape_cast %10 : vector<1x1x8x128xf32> to vector<8x128xf32>
    %12 = arith.mulf %5, %11 : vector<8x128xf32>
    %13 = arith.addf %4, %12 : vector<8x128xf32>
    %14 = vector.extract_strided_slice %2 {offsets = [0, 1], sizes = [8, 128], strides = [1, 1]} : vector<8x256xf32> to vector<8x128xf32>
    %c0_11 = arith.constant 0 : index
    %c1 = arith.constant 1 : index
    %c0_12 = arith.constant 0 : index
    %c0_13 = arith.constant 0 : index
    %15 = vector.load %arg4[%c0_11, %c1, %c0_12, %c0_13] : memref<1x100x8x128xf32, #tpu.memory_space<vmem>>, vector<1x1x8x128xf32>
    %16 = vector.shape_cast %15 : vector<1x1x8x128xf32> to vector<8x128xf32>
    %17 = arith.mulf %14, %16 : vector<8x128xf32>
    %18 = arith.addf %9, %17 : vector<8x128xf32>
    %c0_14 = arith.constant 0 : index
    %c51 = arith.constant 51 : index
    %c0_15 = arith.constant 0 : index
    %c0_16 = arith.constant 0 : index
    %19 = vector.load %arg4[%c0_14, %c51, %c0_15, %c0_16] : memref<1x100x8x128xf32, #tpu.memory_space<vmem>>, vector<1x1x8x128xf32>
    %20 = vector.shape_cast %19 : vector<1x1x8x128xf32> to vector<8x128xf32>
    %21 = arith.mulf %14, %20 : vector<8x128xf32>
    %22 = arith.addf %13, %21 : vector<8x128xf32>
    %23 = vector.extract_strided_slice %2 {offsets = [0, 2], sizes = [8, 128], strides = [1, 1]} : vector<8x256xf32> to vector<8x128xf32>
    %c0_17 = arith.constant 0 : index
    %c2 = arith.constant 2 : index
    %c0_18 = arith.constant 0 : index
    %c0_19 = arith.constant 0 : index
    %24 = vector.load %arg4[%c0_17, %c2, %c0_18, %c0_19] : memref<1x100x8x128xf32, #tpu.memory_space<vmem>>, vector<1x1x8x128xf32>
    %25 = vector.shape_cast %24 : vector<1x1x8x128xf32> to vector<8x128xf32>
    %26 = arith.mulf %23, %25 : vector<8x128xf32>
    %27 = arith.addf %18, %26 : vector<8x128xf32>
    %c0_20 = arith.constant 0 : index
    %c52 = arith.constant 52 : index
    %c0_21 = arith.constant 0 : index
    %c0_22 = arith.constant 0 : index
    %28 = vector.load %arg4[%c0_20, %c52, %c0_21, %c0_22] : memref<1x100x8x128xf32, #tpu.memory_space<vmem>>, vector<1x1x8x128xf32>
    %29 = vector.shape_cast %28 : vector<1x1x8x128xf32> to vector<8x128xf32>
    %30 = arith.mulf %23, %29 : vector<8x128xf32>
    %31 = arith.addf %22, %30 : vector<8x128xf32>
    %32 = vector.extract_strided_slice %2 {offsets = [0, 3], sizes = [8, 128], strides = [1, 1]} : vector<8x256xf32> to vector<8x128xf32>
    %c0_23 = arith.constant 0 : index
    %c3 = arith.constant 3 : index
    %c0_24 = arith.constant 0 : index
    %c0_25 = arith.constant 0 : index
    %33 = vector.load %arg4[%c0_23, %c3, %c0_24, %c0_25] : memref<1x100x8x128xf32, #tpu.memory_space<vmem>>, vector<1x1x8x128xf32>
    %34 = vector.shape_cast %33 : vector<1x1x8x128xf32> to vector<8x128xf32>
    %35 = arith.mulf %32, %34 : vector<8x128xf32>
    %36 = arith.addf %27, %35 : vector<8x128xf32>
    %c0_26 = arith.constant 0 : index
    %c53 = arith.constant 53 : index
    %c0_27 = arith.constant 0 : index
    %c0_28 = arith.constant 0 : index
    %37 = vector.load %arg4[%c0_26, %c53, %c0_27, %c0_28] : memref<1x100x8x128xf32, #tpu.memory_space<vmem>>, vector<1x1x8x128xf32>
    %38 = vector.shape_cast %37 : vector<1x1x8x128xf32> to vector<8x128xf32>
    %39 = arith.mulf %32, %38 : vector<8x128xf32>
    %40 = arith.addf %31, %39 : vector<8x128xf32>
    %41 = vector.extract_strided_slice %2 {offsets = [0, 4], sizes = [8, 128], strides = [1, 1]} : vector<8x256xf32> to vector<8x128xf32>
    %c0_29 = arith.constant 0 : index
    %c4 = arith.constant 4 : index
    %c0_30 = arith.constant 0 : index
    %c0_31 = arith.constant 0 : index
    %42 = vector.load %arg4[%c0_29, %c4, %c0_30, %c0_31] : memref<1x100x8x128xf32, #tpu.memory_space<vmem>>, vector<1x1x8x128xf32>
    %43 = vector.shape_cast %42 : vector<1x1x8x128xf32> to vector<8x128xf32>
    %44 = arith.mulf %41, %43 : vector<8x128xf32>
    %45 = arith.addf %36, %44 : vector<8x128xf32>
    %c0_32 = arith.constant 0 : index
    %c54 = arith.constant 54 : index
    %c0_33 = arith.constant 0 : index
    %c0_34 = arith.constant 0 : index
    %46 = vector.load %arg4[%c0_32, %c54, %c0_33, %c0_34] : memref<1x100x8x128xf32, #tpu.memory_space<vmem>>, vector<1x1x8x128xf32>
    %47 = vector.shape_cast %46 : vector<1x1x8x128xf32> to vector<8x128xf32>
    %48 = arith.mulf %41, %47 : vector<8x128xf32>
    %49 = arith.addf %40, %48 : vector<8x128xf32>
    %50 = vector.extract_strided_slice %2 {offsets = [0, 5], sizes = [8, 128], strides = [1, 1]} : vector<8x256xf32> to vector<8x128xf32>
    %c0_35 = arith.constant 0 : index
    %c5 = arith.constant 5 : index
    %c0_36 = arith.constant 0 : index
    %c0_37 = arith.constant 0 : index
    %51 = vector.load %arg4[%c0_35, %c5, %c0_36, %c0_37] : memref<1x100x8x128xf32, #tpu.memory_space<vmem>>, vector<1x1x8x128xf32>
    %52 = vector.shape_cast %51 : vector<1x1x8x128xf32> to vector<8x128xf32>
    %53 = arith.mulf %50, %52 : vector<8x128xf32>
    %54 = arith.addf %45, %53 : vector<8x128xf32>
    %c0_38 = arith.constant 0 : index
    %c55 = arith.constant 55 : index
    %c0_39 = arith.constant 0 : index
    %c0_40 = arith.constant 0 : index
    %55 = vector.load %arg4[%c0_38, %c55, %c0_39, %c0_40] : memref<1x100x8x128xf32, #tpu.memory_space<vmem>>, vector<1x1x8x128xf32>
    %56 = vector.shape_cast %55 : vector<1x1x8x128xf32> to vector<8x128xf32>
    %57 = arith.mulf %50, %56 : vector<8x128xf32>
    %58 = arith.addf %49, %57 : vector<8x128xf32>
    %59 = vector.extract_strided_slice %2 {offsets = [0, 6], sizes = [8, 128], strides = [1, 1]} : vector<8x256xf32> to vector<8x128xf32>
    %c0_41 = arith.constant 0 : index
    %c6 = arith.constant 6 : index
    %c0_42 = arith.constant 0 : index
    %c0_43 = arith.constant 0 : index
    %60 = vector.load %arg4[%c0_41, %c6, %c0_42, %c0_43] : memref<1x100x8x128xf32, #tpu.memory_space<vmem>>, vector<1x1x8x128xf32>
    %61 = vector.shape_cast %60 : vector<1x1x8x128xf32> to vector<8x128xf32>
    %62 = arith.mulf %59, %61 : vector<8x128xf32>
    %63 = arith.addf %54, %62 : vector<8x128xf32>
    %c0_44 = arith.constant 0 : index
    %c56 = arith.constant 56 : index
    %c0_45 = arith.constant 0 : index
    %c0_46 = arith.constant 0 : index
    %64 = vector.load %arg4[%c0_44, %c56, %c0_45, %c0_46] : memref<1x100x8x128xf32, #tpu.memory_space<vmem>>, vector<1x1x8x128xf32>
    %65 = vector.shape_cast %64 : vector<1x1x8x128xf32> to vector<8x128xf32>
    %66 = arith.mulf %59, %65 : vector<8x128xf32>
    %67 = arith.addf %58, %66 : vector<8x128xf32>
    %68 = vector.extract_strided_slice %2 {offsets = [0, 7], sizes = [8, 128], strides = [1, 1]} : vector<8x256xf32> to vector<8x128xf32>
    %c0_47 = arith.constant 0 : index
    %c7 = arith.constant 7 : index
    %c0_48 = arith.constant 0 : index
    %c0_49 = arith.constant 0 : index
    %69 = vector.load %arg4[%c0_47, %c7, %c0_48, %c0_49] : memref<1x100x8x128xf32, #tpu.memory_space<vmem>>, vector<1x1x8x128xf32>
    %70 = vector.shape_cast %69 : vector<1x1x8x128xf32> to vector<8x128xf32>
    %71 = arith.mulf %68, %70 : vector<8x128xf32>
    %72 = arith.addf %63, %71 : vector<8x128xf32>
    %c0_50 = arith.constant 0 : index
    %c57 = arith.constant 57 : index
    %c0_51 = arith.constant 0 : index
    %c0_52 = arith.constant 0 : index
    %73 = vector.load %arg4[%c0_50, %c57, %c0_51, %c0_52] : memref<1x100x8x128xf32, #tpu.memory_space<vmem>>, vector<1x1x8x128xf32>
    %74 = vector.shape_cast %73 : vector<1x1x8x128xf32> to vector<8x128xf32>
    %75 = arith.mulf %68, %74 : vector<8x128xf32>
    %76 = arith.addf %67, %75 : vector<8x128xf32>
    %77 = vector.extract_strided_slice %2 {offsets = [0, 8], sizes = [8, 128], strides = [1, 1]} : vector<8x256xf32> to vector<8x128xf32>
    %c0_53 = arith.constant 0 : index
    %c8 = arith.constant 8 : index
    %c0_54 = arith.constant 0 : index
    %c0_55 = arith.constant 0 : index
    %78 = vector.load %arg4[%c0_53, %c8, %c0_54, %c0_55] : memref<1x100x8x128xf32, #tpu.memory_space<vmem>>, vector<1x1x8x128xf32>
    %79 = vector.shape_cast %78 : vector<1x1x8x128xf32> to vector<8x128xf32>
    %80 = arith.mulf %77, %79 : vector<8x128xf32>
    %81 = arith.addf %72, %80 : vector<8x128xf32>
    %c0_56 = arith.constant 0 : index
    %c58 = arith.constant 58 : index
    %c0_57 = arith.constant 0 : index
    %c0_58 = arith.constant 0 : index
    %82 = vector.load %arg4[%c0_56, %c58, %c0_57, %c0_58] : memref<1x100x8x128xf32, #tpu.memory_space<vmem>>, vector<1x1x8x128xf32>
    %83 = vector.shape_cast %82 : vector<1x1x8x128xf32> to vector<8x128xf32>
    %84 = arith.mulf %77, %83 : vector<8x128xf32>
    %85 = arith.addf %76, %84 : vector<8x128xf32>
    %86 = vector.extract_strided_slice %2 {offsets = [0, 9], sizes = [8, 128], strides = [1, 1]} : vector<8x256xf32> to vector<8x128xf32>
    %c0_59 = arith.constant 0 : index
    %c9 = arith.constant 9 : index
    %c0_60 = arith.constant 0 : index
    %c0_61 = arith.constant 0 : index
    %87 = vector.load %arg4[%c0_59, %c9, %c0_60, %c0_61] : memref<1x100x8x128xf32, #tpu.memory_space<vmem>>, vector<1x1x8x128xf32>
    %88 = vector.shape_cast %87 : vector<1x1x8x128xf32> to vector<8x128xf32>
    %89 = arith.mulf %86, %88 : vector<8x128xf32>
    %90 = arith.addf %81, %89 : vector<8x128xf32>
    %c0_62 = arith.constant 0 : index
    %c59 = arith.constant 59 : index
    %c0_63 = arith.constant 0 : index
    %c0_64 = arith.constant 0 : index
    %91 = vector.load %arg4[%c0_62, %c59, %c0_63, %c0_64] : memref<1x100x8x128xf32, #tpu.memory_space<vmem>>, vector<1x1x8x128xf32>
    %92 = vector.shape_cast %91 : vector<1x1x8x128xf32> to vector<8x128xf32>
    %93 = arith.mulf %86, %92 : vector<8x128xf32>
    %94 = arith.addf %85, %93 : vector<8x128xf32>
    %95 = vector.extract_strided_slice %2 {offsets = [0, 10], sizes = [8, 128], strides = [1, 1]} : vector<8x256xf32> to vector<8x128xf32>
    %c0_65 = arith.constant 0 : index
    %c10 = arith.constant 10 : index
    %c0_66 = arith.constant 0 : index
    %c0_67 = arith.constant 0 : index
    %96 = vector.load %arg4[%c0_65, %c10, %c0_66, %c0_67] : memref<1x100x8x128xf32, #tpu.memory_space<vmem>>, vector<1x1x8x128xf32>
    %97 = vector.shape_cast %96 : vector<1x1x8x128xf32> to vector<8x128xf32>
    %98 = arith.mulf %95, %97 : vector<8x128xf32>
    %99 = arith.addf %90, %98 : vector<8x128xf32>
    %c0_68 = arith.constant 0 : index
    %c60 = arith.constant 60 : index
    %c0_69 = arith.constant 0 : index
    %c0_70 = arith.constant 0 : index
    %100 = vector.load %arg4[%c0_68, %c60, %c0_69, %c0_70] : memref<1x100x8x128xf32, #tpu.memory_space<vmem>>, vector<1x1x8x128xf32>
    %101 = vector.shape_cast %100 : vector<1x1x8x128xf32> to vector<8x128xf32>
    %102 = arith.mulf %95, %101 : vector<8x128xf32>
    %103 = arith.addf %94, %102 : vector<8x128xf32>
    %104 = vector.extract_strided_slice %2 {offsets = [0, 11], sizes = [8, 128], strides = [1, 1]} : vector<8x256xf32> to vector<8x128xf32>
    %c0_71 = arith.constant 0 : index
    %c11 = arith.constant 11 : index
    %c0_72 = arith.constant 0 : index
    %c0_73 = arith.constant 0 : index
    %105 = vector.load %arg4[%c0_71, %c11, %c0_72, %c0_73] : memref<1x100x8x128xf32, #tpu.memory_space<vmem>>, vector<1x1x8x128xf32>
    %106 = vector.shape_cast %105 : vector<1x1x8x128xf32> to vector<8x128xf32>
    %107 = arith.mulf %104, %106 : vector<8x128xf32>
    %108 = arith.addf %99, %107 : vector<8x128xf32>
    %c0_74 = arith.constant 0 : index
    %c61 = arith.constant 61 : index
    %c0_75 = arith.constant 0 : index
    %c0_76 = arith.constant 0 : index
    %109 = vector.load %arg4[%c0_74, %c61, %c0_75, %c0_76] : memref<1x100x8x128xf32, #tpu.memory_space<vmem>>, vector<1x1x8x128xf32>
    %110 = vector.shape_cast %109 : vector<1x1x8x128xf32> to vector<8x128xf32>
    %111 = arith.mulf %104, %110 : vector<8x128xf32>
    %112 = arith.addf %103, %111 : vector<8x128xf32>
    %113 = vector.extract_strided_slice %2 {offsets = [0, 12], sizes = [8, 128], strides = [1, 1]} : vector<8x256xf32> to vector<8x128xf32>
    %c0_77 = arith.constant 0 : index
    %c12 = arith.constant 12 : index
    %c0_78 = arith.constant 0 : index
    %c0_79 = arith.constant 0 : index
    %114 = vector.load %arg4[%c0_77, %c12, %c0_78, %c0_79] : memref<1x100x8x128xf32, #tpu.memory_space<vmem>>, vector<1x1x8x128xf32>
    %115 = vector.shape_cast %114 : vector<1x1x8x128xf32> to vector<8x128xf32>
    %116 = arith.mulf %113, %115 : vector<8x128xf32>
    %117 = arith.addf %108, %116 : vector<8x128xf32>
    %c0_80 = arith.constant 0 : index
    %c62 = arith.constant 62 : index
    %c0_81 = arith.constant 0 : index
    %c0_82 = arith.constant 0 : index
    %118 = vector.load %arg4[%c0_80, %c62, %c0_81, %c0_82] : memref<1x100x8x128xf32, #tpu.memory_space<vmem>>, vector<1x1x8x128xf32>
    %119 = vector.shape_cast %118 : vector<1x1x8x128xf32> to vector<8x128xf32>
    %120 = arith.mulf %113, %119 : vector<8x128xf32>
    %121 = arith.addf %112, %120 : vector<8x128xf32>
    %122 = vector.extract_strided_slice %2 {offsets = [0, 13], sizes = [8, 128], strides = [1, 1]} : vector<8x256xf32> to vector<8x128xf32>
    %c0_83 = arith.constant 0 : index
    %c13 = arith.constant 13 : index
    %c0_84 = arith.constant 0 : index
    %c0_85 = arith.constant 0 : index
    %123 = vector.load %arg4[%c0_83, %c13, %c0_84, %c0_85] : memref<1x100x8x128xf32, #tpu.memory_space<vmem>>, vector<1x1x8x128xf32>
    %124 = vector.shape_cast %123 : vector<1x1x8x128xf32> to vector<8x128xf32>
    %125 = arith.mulf %122, %124 : vector<8x128xf32>
    %126 = arith.addf %117, %125 : vector<8x128xf32>
    %c0_86 = arith.constant 0 : index
    %c63 = arith.constant 63 : index
    %c0_87 = arith.constant 0 : index
    %c0_88 = arith.constant 0 : index
    %127 = vector.load %arg4[%c0_86, %c63, %c0_87, %c0_88] : memref<1x100x8x128xf32, #tpu.memory_space<vmem>>, vector<1x1x8x128xf32>
    %128 = vector.shape_cast %127 : vector<1x1x8x128xf32> to vector<8x128xf32>
    %129 = arith.mulf %122, %128 : vector<8x128xf32>
    %130 = arith.addf %121, %129 : vector<8x128xf32>
    %131 = vector.extract_strided_slice %2 {offsets = [0, 14], sizes = [8, 128], strides = [1, 1]} : vector<8x256xf32> to vector<8x128xf32>
    %c0_89 = arith.constant 0 : index
    %c14 = arith.constant 14 : index
    %c0_90 = arith.constant 0 : index
    %c0_91 = arith.constant 0 : index
    %132 = vector.load %arg4[%c0_89, %c14, %c0_90, %c0_91] : memref<1x100x8x128xf32, #tpu.memory_space<vmem>>, vector<1x1x8x128xf32>
    %133 = vector.shape_cast %132 : vector<1x1x8x128xf32> to vector<8x128xf32>
    %134 = arith.mulf %131, %133 : vector<8x128xf32>
    %135 = arith.addf %126, %134 : vector<8x128xf32>
    %c0_92 = arith.constant 0 : index
    %c64 = arith.constant 64 : index
    %c0_93 = arith.constant 0 : index
    %c0_94 = arith.constant 0 : index
    %136 = vector.load %arg4[%c0_92, %c64, %c0_93, %c0_94] : memref<1x100x8x128xf32, #tpu.memory_space<vmem>>, vector<1x1x8x128xf32>
    %137 = vector.shape_cast %136 : vector<1x1x8x128xf32> to vector<8x128xf32>
    %138 = arith.mulf %131, %137 : vector<8x128xf32>
    %139 = arith.addf %130, %138 : vector<8x128xf32>
    %140 = vector.extract_strided_slice %2 {offsets = [0, 15], sizes = [8, 128], strides = [1, 1]} : vector<8x256xf32> to vector<8x128xf32>
    %c0_95 = arith.constant 0 : index
    %c15 = arith.constant 15 : index
    %c0_96 = arith.constant 0 : index
    %c0_97 = arith.constant 0 : index
    %141 = vector.load %arg4[%c0_95, %c15, %c0_96, %c0_97] : memref<1x100x8x128xf32, #tpu.memory_space<vmem>>, vector<1x1x8x128xf32>
    %142 = vector.shape_cast %141 : vector<1x1x8x128xf32> to vector<8x128xf32>
    %143 = arith.mulf %140, %142 : vector<8x128xf32>
    %144 = arith.addf %135, %143 : vector<8x128xf32>
    %c0_98 = arith.constant 0 : index
    %c65 = arith.constant 65 : index
    %c0_99 = arith.constant 0 : index
    %c0_100 = arith.constant 0 : index
    %145 = vector.load %arg4[%c0_98, %c65, %c0_99, %c0_100] : memref<1x100x8x128xf32, #tpu.memory_space<vmem>>, vector<1x1x8x128xf32>
    %146 = vector.shape_cast %145 : vector<1x1x8x128xf32> to vector<8x128xf32>
    %147 = arith.mulf %140, %146 : vector<8x128xf32>
    %148 = arith.addf %139, %147 : vector<8x128xf32>
    %149 = vector.extract_strided_slice %2 {offsets = [0, 16], sizes = [8, 128], strides = [1, 1]} : vector<8x256xf32> to vector<8x128xf32>
    %c0_101 = arith.constant 0 : index
    %c16 = arith.constant 16 : index
    %c0_102 = arith.constant 0 : index
    %c0_103 = arith.constant 0 : index
    %150 = vector.load %arg4[%c0_101, %c16, %c0_102, %c0_103] : memref<1x100x8x128xf32, #tpu.memory_space<vmem>>, vector<1x1x8x128xf32>
    %151 = vector.shape_cast %150 : vector<1x1x8x128xf32> to vector<8x128xf32>
    %152 = arith.mulf %149, %151 : vector<8x128xf32>
    %153 = arith.addf %144, %152 : vector<8x128xf32>
    %c0_104 = arith.constant 0 : index
    %c66 = arith.constant 66 : index
    %c0_105 = arith.constant 0 : index
    %c0_106 = arith.constant 0 : index
    %154 = vector.load %arg4[%c0_104, %c66, %c0_105, %c0_106] : memref<1x100x8x128xf32, #tpu.memory_space<vmem>>, vector<1x1x8x128xf32>
    %155 = vector.shape_cast %154 : vector<1x1x8x128xf32> to vector<8x128xf32>
    %156 = arith.mulf %149, %155 : vector<8x128xf32>
    %157 = arith.addf %148, %156 : vector<8x128xf32>
    %158 = vector.extract_strided_slice %2 {offsets = [0, 17], sizes = [8, 128], strides = [1, 1]} : vector<8x256xf32> to vector<8x128xf32>
    %c0_107 = arith.constant 0 : index
    %c17 = arith.constant 17 : index
    %c0_108 = arith.constant 0 : index
    %c0_109 = arith.constant 0 : index
    %159 = vector.load %arg4[%c0_107, %c17, %c0_108, %c0_109] : memref<1x100x8x128xf32, #tpu.memory_space<vmem>>, vector<1x1x8x128xf32>
    %160 = vector.shape_cast %159 : vector<1x1x8x128xf32> to vector<8x128xf32>
    %161 = arith.mulf %158, %160 : vector<8x128xf32>
    %162 = arith.addf %153, %161 : vector<8x128xf32>
    %c0_110 = arith.constant 0 : index
    %c67 = arith.constant 67 : index
    %c0_111 = arith.constant 0 : index
    %c0_112 = arith.constant 0 : index
    %163 = vector.load %arg4[%c0_110, %c67, %c0_111, %c0_112] : memref<1x100x8x128xf32, #tpu.memory_space<vmem>>, vector<1x1x8x128xf32>
    %164 = vector.shape_cast %163 : vector<1x1x8x128xf32> to vector<8x128xf32>
    %165 = arith.mulf %158, %164 : vector<8x128xf32>
    %166 = arith.addf %157, %165 : vector<8x128xf32>
    %167 = vector.extract_strided_slice %2 {offsets = [0, 18], sizes = [8, 128], strides = [1, 1]} : vector<8x256xf32> to vector<8x128xf32>
    %c0_113 = arith.constant 0 : index
    %c18 = arith.constant 18 : index
    %c0_114 = arith.constant 0 : index
    %c0_115 = arith.constant 0 : index
    %168 = vector.load %arg4[%c0_113, %c18, %c0_114, %c0_115] : memref<1x100x8x128xf32, #tpu.memory_space<vmem>>, vector<1x1x8x128xf32>
    %169 = vector.shape_cast %168 : vector<1x1x8x128xf32> to vector<8x128xf32>
    %170 = arith.mulf %167, %169 : vector<8x128xf32>
    %171 = arith.addf %162, %170 : vector<8x128xf32>
    %c0_116 = arith.constant 0 : index
    %c68 = arith.constant 68 : index
    %c0_117 = arith.constant 0 : index
    %c0_118 = arith.constant 0 : index
    %172 = vector.load %arg4[%c0_116, %c68, %c0_117, %c0_118] : memref<1x100x8x128xf32, #tpu.memory_space<vmem>>, vector<1x1x8x128xf32>
    %173 = vector.shape_cast %172 : vector<1x1x8x128xf32> to vector<8x128xf32>
    %174 = arith.mulf %167, %173 : vector<8x128xf32>
    %175 = arith.addf %166, %174 : vector<8x128xf32>
    %176 = vector.extract_strided_slice %2 {offsets = [0, 19], sizes = [8, 128], strides = [1, 1]} : vector<8x256xf32> to vector<8x128xf32>
    %c0_119 = arith.constant 0 : index
    %c19 = arith.constant 19 : index
    %c0_120 = arith.constant 0 : index
    %c0_121 = arith.constant 0 : index
    %177 = vector.load %arg4[%c0_119, %c19, %c0_120, %c0_121] : memref<1x100x8x128xf32, #tpu.memory_space<vmem>>, vector<1x1x8x128xf32>
    %178 = vector.shape_cast %177 : vector<1x1x8x128xf32> to vector<8x128xf32>
    %179 = arith.mulf %176, %178 : vector<8x128xf32>
    %180 = arith.addf %171, %179 : vector<8x128xf32>
    %c0_122 = arith.constant 0 : index
    %c69 = arith.constant 69 : index
    %c0_123 = arith.constant 0 : index
    %c0_124 = arith.constant 0 : index
    %181 = vector.load %arg4[%c0_122, %c69, %c0_123, %c0_124] : memref<1x100x8x128xf32, #tpu.memory_space<vmem>>, vector<1x1x8x128xf32>
    %182 = vector.shape_cast %181 : vector<1x1x8x128xf32> to vector<8x128xf32>
    %183 = arith.mulf %176, %182 : vector<8x128xf32>
    %184 = arith.addf %175, %183 : vector<8x128xf32>
    %185 = vector.extract_strided_slice %2 {offsets = [0, 20], sizes = [8, 128], strides = [1, 1]} : vector<8x256xf32> to vector<8x128xf32>
    %c0_125 = arith.constant 0 : index
    %c20 = arith.constant 20 : index
    %c0_126 = arith.constant 0 : index
    %c0_127 = arith.constant 0 : index
    %186 = vector.load %arg4[%c0_125, %c20, %c0_126, %c0_127] : memref<1x100x8x128xf32, #tpu.memory_space<vmem>>, vector<1x1x8x128xf32>
    %187 = vector.shape_cast %186 : vector<1x1x8x128xf32> to vector<8x128xf32>
    %188 = arith.mulf %185, %187 : vector<8x128xf32>
    %189 = arith.addf %180, %188 : vector<8x128xf32>
    %c0_128 = arith.constant 0 : index
    %c70 = arith.constant 70 : index
    %c0_129 = arith.constant 0 : index
    %c0_130 = arith.constant 0 : index
    %190 = vector.load %arg4[%c0_128, %c70, %c0_129, %c0_130] : memref<1x100x8x128xf32, #tpu.memory_space<vmem>>, vector<1x1x8x128xf32>
    %191 = vector.shape_cast %190 : vector<1x1x8x128xf32> to vector<8x128xf32>
    %192 = arith.mulf %185, %191 : vector<8x128xf32>
    %193 = arith.addf %184, %192 : vector<8x128xf32>
    %194 = vector.extract_strided_slice %2 {offsets = [0, 21], sizes = [8, 128], strides = [1, 1]} : vector<8x256xf32> to vector<8x128xf32>
    %c0_131 = arith.constant 0 : index
    %c21 = arith.constant 21 : index
    %c0_132 = arith.constant 0 : index
    %c0_133 = arith.constant 0 : index
    %195 = vector.load %arg4[%c0_131, %c21, %c0_132, %c0_133] : memref<1x100x8x128xf32, #tpu.memory_space<vmem>>, vector<1x1x8x128xf32>
    %196 = vector.shape_cast %195 : vector<1x1x8x128xf32> to vector<8x128xf32>
    %197 = arith.mulf %194, %196 : vector<8x128xf32>
    %198 = arith.addf %189, %197 : vector<8x128xf32>
    %c0_134 = arith.constant 0 : index
    %c71 = arith.constant 71 : index
    %c0_135 = arith.constant 0 : index
    %c0_136 = arith.constant 0 : index
    %199 = vector.load %arg4[%c0_134, %c71, %c0_135, %c0_136] : memref<1x100x8x128xf32, #tpu.memory_space<vmem>>, vector<1x1x8x128xf32>
    %200 = vector.shape_cast %199 : vector<1x1x8x128xf32> to vector<8x128xf32>
    %201 = arith.mulf %194, %200 : vector<8x128xf32>
    %202 = arith.addf %193, %201 : vector<8x128xf32>
    %203 = vector.extract_strided_slice %2 {offsets = [0, 22], sizes = [8, 128], strides = [1, 1]} : vector<8x256xf32> to vector<8x128xf32>
    %c0_137 = arith.constant 0 : index
    %c22 = arith.constant 22 : index
    %c0_138 = arith.constant 0 : index
    %c0_139 = arith.constant 0 : index
    %204 = vector.load %arg4[%c0_137, %c22, %c0_138, %c0_139] : memref<1x100x8x128xf32, #tpu.memory_space<vmem>>, vector<1x1x8x128xf32>
    %205 = vector.shape_cast %204 : vector<1x1x8x128xf32> to vector<8x128xf32>
    %206 = arith.mulf %203, %205 : vector<8x128xf32>
    %207 = arith.addf %198, %206 : vector<8x128xf32>
    %c0_140 = arith.constant 0 : index
    %c72 = arith.constant 72 : index
    %c0_141 = arith.constant 0 : index
    %c0_142 = arith.constant 0 : index
    %208 = vector.load %arg4[%c0_140, %c72, %c0_141, %c0_142] : memref<1x100x8x128xf32, #tpu.memory_space<vmem>>, vector<1x1x8x128xf32>
    %209 = vector.shape_cast %208 : vector<1x1x8x128xf32> to vector<8x128xf32>
    %210 = arith.mulf %203, %209 : vector<8x128xf32>
    %211 = arith.addf %202, %210 : vector<8x128xf32>
    %212 = vector.extract_strided_slice %2 {offsets = [0, 23], sizes = [8, 128], strides = [1, 1]} : vector<8x256xf32> to vector<8x128xf32>
    %c0_143 = arith.constant 0 : index
    %c23 = arith.constant 23 : index
    %c0_144 = arith.constant 0 : index
    %c0_145 = arith.constant 0 : index
    %213 = vector.load %arg4[%c0_143, %c23, %c0_144, %c0_145] : memref<1x100x8x128xf32, #tpu.memory_space<vmem>>, vector<1x1x8x128xf32>
    %214 = vector.shape_cast %213 : vector<1x1x8x128xf32> to vector<8x128xf32>
    %215 = arith.mulf %212, %214 : vector<8x128xf32>
    %216 = arith.addf %207, %215 : vector<8x128xf32>
    %c0_146 = arith.constant 0 : index
    %c73 = arith.constant 73 : index
    %c0_147 = arith.constant 0 : index
    %c0_148 = arith.constant 0 : index
    %217 = vector.load %arg4[%c0_146, %c73, %c0_147, %c0_148] : memref<1x100x8x128xf32, #tpu.memory_space<vmem>>, vector<1x1x8x128xf32>
    %218 = vector.shape_cast %217 : vector<1x1x8x128xf32> to vector<8x128xf32>
    %219 = arith.mulf %212, %218 : vector<8x128xf32>
    %220 = arith.addf %211, %219 : vector<8x128xf32>
    %221 = vector.extract_strided_slice %2 {offsets = [0, 24], sizes = [8, 128], strides = [1, 1]} : vector<8x256xf32> to vector<8x128xf32>
    %c0_149 = arith.constant 0 : index
    %c24 = arith.constant 24 : index
    %c0_150 = arith.constant 0 : index
    %c0_151 = arith.constant 0 : index
    %222 = vector.load %arg4[%c0_149, %c24, %c0_150, %c0_151] : memref<1x100x8x128xf32, #tpu.memory_space<vmem>>, vector<1x1x8x128xf32>
    %223 = vector.shape_cast %222 : vector<1x1x8x128xf32> to vector<8x128xf32>
    %224 = arith.mulf %221, %223 : vector<8x128xf32>
    %225 = arith.addf %216, %224 : vector<8x128xf32>
    %c0_152 = arith.constant 0 : index
    %c74 = arith.constant 74 : index
    %c0_153 = arith.constant 0 : index
    %c0_154 = arith.constant 0 : index
    %226 = vector.load %arg4[%c0_152, %c74, %c0_153, %c0_154] : memref<1x100x8x128xf32, #tpu.memory_space<vmem>>, vector<1x1x8x128xf32>
    %227 = vector.shape_cast %226 : vector<1x1x8x128xf32> to vector<8x128xf32>
    %228 = arith.mulf %221, %227 : vector<8x128xf32>
    %229 = arith.addf %220, %228 : vector<8x128xf32>
    %230 = vector.extract_strided_slice %2 {offsets = [0, 25], sizes = [8, 128], strides = [1, 1]} : vector<8x256xf32> to vector<8x128xf32>
    %c0_155 = arith.constant 0 : index
    %c25 = arith.constant 25 : index
    %c0_156 = arith.constant 0 : index
    %c0_157 = arith.constant 0 : index
    %231 = vector.load %arg4[%c0_155, %c25, %c0_156, %c0_157] : memref<1x100x8x128xf32, #tpu.memory_space<vmem>>, vector<1x1x8x128xf32>
    %232 = vector.shape_cast %231 : vector<1x1x8x128xf32> to vector<8x128xf32>
    %233 = arith.mulf %230, %232 : vector<8x128xf32>
    %234 = arith.addf %225, %233 : vector<8x128xf32>
    %c0_158 = arith.constant 0 : index
    %c75 = arith.constant 75 : index
    %c0_159 = arith.constant 0 : index
    %c0_160 = arith.constant 0 : index
    %235 = vector.load %arg4[%c0_158, %c75, %c0_159, %c0_160] : memref<1x100x8x128xf32, #tpu.memory_space<vmem>>, vector<1x1x8x128xf32>
    %236 = vector.shape_cast %235 : vector<1x1x8x128xf32> to vector<8x128xf32>
    %237 = arith.mulf %230, %236 : vector<8x128xf32>
    %238 = arith.addf %229, %237 : vector<8x128xf32>
    %239 = vector.extract_strided_slice %2 {offsets = [0, 26], sizes = [8, 128], strides = [1, 1]} : vector<8x256xf32> to vector<8x128xf32>
    %c0_161 = arith.constant 0 : index
    %c26 = arith.constant 26 : index
    %c0_162 = arith.constant 0 : index
    %c0_163 = arith.constant 0 : index
    %240 = vector.load %arg4[%c0_161, %c26, %c0_162, %c0_163] : memref<1x100x8x128xf32, #tpu.memory_space<vmem>>, vector<1x1x8x128xf32>
    %241 = vector.shape_cast %240 : vector<1x1x8x128xf32> to vector<8x128xf32>
    %242 = arith.mulf %239, %241 : vector<8x128xf32>
    %243 = arith.addf %234, %242 : vector<8x128xf32>
    %c0_164 = arith.constant 0 : index
    %c76 = arith.constant 76 : index
    %c0_165 = arith.constant 0 : index
    %c0_166 = arith.constant 0 : index
    %244 = vector.load %arg4[%c0_164, %c76, %c0_165, %c0_166] : memref<1x100x8x128xf32, #tpu.memory_space<vmem>>, vector<1x1x8x128xf32>
    %245 = vector.shape_cast %244 : vector<1x1x8x128xf32> to vector<8x128xf32>
    %246 = arith.mulf %239, %245 : vector<8x128xf32>
    %247 = arith.addf %238, %246 : vector<8x128xf32>
    %248 = vector.extract_strided_slice %2 {offsets = [0, 27], sizes = [8, 128], strides = [1, 1]} : vector<8x256xf32> to vector<8x128xf32>
    %c0_167 = arith.constant 0 : index
    %c27 = arith.constant 27 : index
    %c0_168 = arith.constant 0 : index
    %c0_169 = arith.constant 0 : index
    %249 = vector.load %arg4[%c0_167, %c27, %c0_168, %c0_169] : memref<1x100x8x128xf32, #tpu.memory_space<vmem>>, vector<1x1x8x128xf32>
    %250 = vector.shape_cast %249 : vector<1x1x8x128xf32> to vector<8x128xf32>
    %251 = arith.mulf %248, %250 : vector<8x128xf32>
    %252 = arith.addf %243, %251 : vector<8x128xf32>
    %c0_170 = arith.constant 0 : index
    %c77 = arith.constant 77 : index
    %c0_171 = arith.constant 0 : index
    %c0_172 = arith.constant 0 : index
    %253 = vector.load %arg4[%c0_170, %c77, %c0_171, %c0_172] : memref<1x100x8x128xf32, #tpu.memory_space<vmem>>, vector<1x1x8x128xf32>
    %254 = vector.shape_cast %253 : vector<1x1x8x128xf32> to vector<8x128xf32>
    %255 = arith.mulf %248, %254 : vector<8x128xf32>
    %256 = arith.addf %247, %255 : vector<8x128xf32>
    %257 = vector.extract_strided_slice %2 {offsets = [0, 28], sizes = [8, 128], strides = [1, 1]} : vector<8x256xf32> to vector<8x128xf32>
    %c0_173 = arith.constant 0 : index
    %c28 = arith.constant 28 : index
    %c0_174 = arith.constant 0 : index
    %c0_175 = arith.constant 0 : index
    %258 = vector.load %arg4[%c0_173, %c28, %c0_174, %c0_175] : memref<1x100x8x128xf32, #tpu.memory_space<vmem>>, vector<1x1x8x128xf32>
    %259 = vector.shape_cast %258 : vector<1x1x8x128xf32> to vector<8x128xf32>
    %260 = arith.mulf %257, %259 : vector<8x128xf32>
    %261 = arith.addf %252, %260 : vector<8x128xf32>
    %c0_176 = arith.constant 0 : index
    %c78 = arith.constant 78 : index
    %c0_177 = arith.constant 0 : index
    %c0_178 = arith.constant 0 : index
    %262 = vector.load %arg4[%c0_176, %c78, %c0_177, %c0_178] : memref<1x100x8x128xf32, #tpu.memory_space<vmem>>, vector<1x1x8x128xf32>
    %263 = vector.shape_cast %262 : vector<1x1x8x128xf32> to vector<8x128xf32>
    %264 = arith.mulf %257, %263 : vector<8x128xf32>
    %265 = arith.addf %256, %264 : vector<8x128xf32>
    %266 = vector.extract_strided_slice %2 {offsets = [0, 29], sizes = [8, 128], strides = [1, 1]} : vector<8x256xf32> to vector<8x128xf32>
    %c0_179 = arith.constant 0 : index
    %c29 = arith.constant 29 : index
    %c0_180 = arith.constant 0 : index
    %c0_181 = arith.constant 0 : index
    %267 = vector.load %arg4[%c0_179, %c29, %c0_180, %c0_181] : memref<1x100x8x128xf32, #tpu.memory_space<vmem>>, vector<1x1x8x128xf32>
    %268 = vector.shape_cast %267 : vector<1x1x8x128xf32> to vector<8x128xf32>
    %269 = arith.mulf %266, %268 : vector<8x128xf32>
    %270 = arith.addf %261, %269 : vector<8x128xf32>
    %c0_182 = arith.constant 0 : index
    %c79 = arith.constant 79 : index
    %c0_183 = arith.constant 0 : index
    %c0_184 = arith.constant 0 : index
    %271 = vector.load %arg4[%c0_182, %c79, %c0_183, %c0_184] : memref<1x100x8x128xf32, #tpu.memory_space<vmem>>, vector<1x1x8x128xf32>
    %272 = vector.shape_cast %271 : vector<1x1x8x128xf32> to vector<8x128xf32>
    %273 = arith.mulf %266, %272 : vector<8x128xf32>
    %274 = arith.addf %265, %273 : vector<8x128xf32>
    %275 = vector.extract_strided_slice %2 {offsets = [0, 30], sizes = [8, 128], strides = [1, 1]} : vector<8x256xf32> to vector<8x128xf32>
    %c0_185 = arith.constant 0 : index
    %c30 = arith.constant 30 : index
    %c0_186 = arith.constant 0 : index
    %c0_187 = arith.constant 0 : index
    %276 = vector.load %arg4[%c0_185, %c30, %c0_186, %c0_187] : memref<1x100x8x128xf32, #tpu.memory_space<vmem>>, vector<1x1x8x128xf32>
    %277 = vector.shape_cast %276 : vector<1x1x8x128xf32> to vector<8x128xf32>
    %278 = arith.mulf %275, %277 : vector<8x128xf32>
    %279 = arith.addf %270, %278 : vector<8x128xf32>
    %c0_188 = arith.constant 0 : index
    %c80 = arith.constant 80 : index
    %c0_189 = arith.constant 0 : index
    %c0_190 = arith.constant 0 : index
    %280 = vector.load %arg4[%c0_188, %c80, %c0_189, %c0_190] : memref<1x100x8x128xf32, #tpu.memory_space<vmem>>, vector<1x1x8x128xf32>
    %281 = vector.shape_cast %280 : vector<1x1x8x128xf32> to vector<8x128xf32>
    %282 = arith.mulf %275, %281 : vector<8x128xf32>
    %283 = arith.addf %274, %282 : vector<8x128xf32>
    %284 = vector.extract_strided_slice %2 {offsets = [0, 31], sizes = [8, 128], strides = [1, 1]} : vector<8x256xf32> to vector<8x128xf32>
    %c0_191 = arith.constant 0 : index
    %c31 = arith.constant 31 : index
    %c0_192 = arith.constant 0 : index
    %c0_193 = arith.constant 0 : index
    %285 = vector.load %arg4[%c0_191, %c31, %c0_192, %c0_193] : memref<1x100x8x128xf32, #tpu.memory_space<vmem>>, vector<1x1x8x128xf32>
    %286 = vector.shape_cast %285 : vector<1x1x8x128xf32> to vector<8x128xf32>
    %287 = arith.mulf %284, %286 : vector<8x128xf32>
    %288 = arith.addf %279, %287 : vector<8x128xf32>
    %c0_194 = arith.constant 0 : index
    %c81 = arith.constant 81 : index
    %c0_195 = arith.constant 0 : index
    %c0_196 = arith.constant 0 : index
    %289 = vector.load %arg4[%c0_194, %c81, %c0_195, %c0_196] : memref<1x100x8x128xf32, #tpu.memory_space<vmem>>, vector<1x1x8x128xf32>
    %290 = vector.shape_cast %289 : vector<1x1x8x128xf32> to vector<8x128xf32>
    %291 = arith.mulf %284, %290 : vector<8x128xf32>
    %292 = arith.addf %283, %291 : vector<8x128xf32>
    %293 = vector.extract_strided_slice %2 {offsets = [0, 32], sizes = [8, 128], strides = [1, 1]} : vector<8x256xf32> to vector<8x128xf32>
    %c0_197 = arith.constant 0 : index
    %c32 = arith.constant 32 : index
    %c0_198 = arith.constant 0 : index
    %c0_199 = arith.constant 0 : index
    %294 = vector.load %arg4[%c0_197, %c32, %c0_198, %c0_199] : memref<1x100x8x128xf32, #tpu.memory_space<vmem>>, vector<1x1x8x128xf32>
    %295 = vector.shape_cast %294 : vector<1x1x8x128xf32> to vector<8x128xf32>
    %296 = arith.mulf %293, %295 : vector<8x128xf32>
    %297 = arith.addf %288, %296 : vector<8x128xf32>
    %c0_200 = arith.constant 0 : index
    %c82 = arith.constant 82 : index
    %c0_201 = arith.constant 0 : index
    %c0_202 = arith.constant 0 : index
    %298 = vector.load %arg4[%c0_200, %c82, %c0_201, %c0_202] : memref<1x100x8x128xf32, #tpu.memory_space<vmem>>, vector<1x1x8x128xf32>
    %299 = vector.shape_cast %298 : vector<1x1x8x128xf32> to vector<8x128xf32>
    %300 = arith.mulf %293, %299 : vector<8x128xf32>
    %301 = arith.addf %292, %300 : vector<8x128xf32>
    %302 = vector.extract_strided_slice %2 {offsets = [0, 33], sizes = [8, 128], strides = [1, 1]} : vector<8x256xf32> to vector<8x128xf32>
    %c0_203 = arith.constant 0 : index
    %c33 = arith.constant 33 : index
    %c0_204 = arith.constant 0 : index
    %c0_205 = arith.constant 0 : index
    %303 = vector.load %arg4[%c0_203, %c33, %c0_204, %c0_205] : memref<1x100x8x128xf32, #tpu.memory_space<vmem>>, vector<1x1x8x128xf32>
    %304 = vector.shape_cast %303 : vector<1x1x8x128xf32> to vector<8x128xf32>
    %305 = arith.mulf %302, %304 : vector<8x128xf32>
    %306 = arith.addf %297, %305 : vector<8x128xf32>
    %c0_206 = arith.constant 0 : index
    %c83 = arith.constant 83 : index
    %c0_207 = arith.constant 0 : index
    %c0_208 = arith.constant 0 : index
    %307 = vector.load %arg4[%c0_206, %c83, %c0_207, %c0_208] : memref<1x100x8x128xf32, #tpu.memory_space<vmem>>, vector<1x1x8x128xf32>
    %308 = vector.shape_cast %307 : vector<1x1x8x128xf32> to vector<8x128xf32>
    %309 = arith.mulf %302, %308 : vector<8x128xf32>
    %310 = arith.addf %301, %309 : vector<8x128xf32>
    %311 = vector.extract_strided_slice %2 {offsets = [0, 34], sizes = [8, 128], strides = [1, 1]} : vector<8x256xf32> to vector<8x128xf32>
    %c0_209 = arith.constant 0 : index
    %c34 = arith.constant 34 : index
    %c0_210 = arith.constant 0 : index
    %c0_211 = arith.constant 0 : index
    %312 = vector.load %arg4[%c0_209, %c34, %c0_210, %c0_211] : memref<1x100x8x128xf32, #tpu.memory_space<vmem>>, vector<1x1x8x128xf32>
    %313 = vector.shape_cast %312 : vector<1x1x8x128xf32> to vector<8x128xf32>
    %314 = arith.mulf %311, %313 : vector<8x128xf32>
    %315 = arith.addf %306, %314 : vector<8x128xf32>
    %c0_212 = arith.constant 0 : index
    %c84 = arith.constant 84 : index
    %c0_213 = arith.constant 0 : index
    %c0_214 = arith.constant 0 : index
    %316 = vector.load %arg4[%c0_212, %c84, %c0_213, %c0_214] : memref<1x100x8x128xf32, #tpu.memory_space<vmem>>, vector<1x1x8x128xf32>
    %317 = vector.shape_cast %316 : vector<1x1x8x128xf32> to vector<8x128xf32>
    %318 = arith.mulf %311, %317 : vector<8x128xf32>
    %319 = arith.addf %310, %318 : vector<8x128xf32>
    %320 = vector.extract_strided_slice %2 {offsets = [0, 35], sizes = [8, 128], strides = [1, 1]} : vector<8x256xf32> to vector<8x128xf32>
    %c0_215 = arith.constant 0 : index
    %c35 = arith.constant 35 : index
    %c0_216 = arith.constant 0 : index
    %c0_217 = arith.constant 0 : index
    %321 = vector.load %arg4[%c0_215, %c35, %c0_216, %c0_217] : memref<1x100x8x128xf32, #tpu.memory_space<vmem>>, vector<1x1x8x128xf32>
    %322 = vector.shape_cast %321 : vector<1x1x8x128xf32> to vector<8x128xf32>
    %323 = arith.mulf %320, %322 : vector<8x128xf32>
    %324 = arith.addf %315, %323 : vector<8x128xf32>
    %c0_218 = arith.constant 0 : index
    %c85 = arith.constant 85 : index
    %c0_219 = arith.constant 0 : index
    %c0_220 = arith.constant 0 : index
    %325 = vector.load %arg4[%c0_218, %c85, %c0_219, %c0_220] : memref<1x100x8x128xf32, #tpu.memory_space<vmem>>, vector<1x1x8x128xf32>
    %326 = vector.shape_cast %325 : vector<1x1x8x128xf32> to vector<8x128xf32>
    %327 = arith.mulf %320, %326 : vector<8x128xf32>
    %328 = arith.addf %319, %327 : vector<8x128xf32>
    %329 = vector.extract_strided_slice %2 {offsets = [0, 36], sizes = [8, 128], strides = [1, 1]} : vector<8x256xf32> to vector<8x128xf32>
    %c0_221 = arith.constant 0 : index
    %c36 = arith.constant 36 : index
    %c0_222 = arith.constant 0 : index
    %c0_223 = arith.constant 0 : index
    %330 = vector.load %arg4[%c0_221, %c36, %c0_222, %c0_223] : memref<1x100x8x128xf32, #tpu.memory_space<vmem>>, vector<1x1x8x128xf32>
    %331 = vector.shape_cast %330 : vector<1x1x8x128xf32> to vector<8x128xf32>
    %332 = arith.mulf %329, %331 : vector<8x128xf32>
    %333 = arith.addf %324, %332 : vector<8x128xf32>
    %c0_224 = arith.constant 0 : index
    %c86 = arith.constant 86 : index
    %c0_225 = arith.constant 0 : index
    %c0_226 = arith.constant 0 : index
    %334 = vector.load %arg4[%c0_224, %c86, %c0_225, %c0_226] : memref<1x100x8x128xf32, #tpu.memory_space<vmem>>, vector<1x1x8x128xf32>
    %335 = vector.shape_cast %334 : vector<1x1x8x128xf32> to vector<8x128xf32>
    %336 = arith.mulf %329, %335 : vector<8x128xf32>
    %337 = arith.addf %328, %336 : vector<8x128xf32>
    %338 = vector.extract_strided_slice %2 {offsets = [0, 37], sizes = [8, 128], strides = [1, 1]} : vector<8x256xf32> to vector<8x128xf32>
    %c0_227 = arith.constant 0 : index
    %c37 = arith.constant 37 : index
    %c0_228 = arith.constant 0 : index
    %c0_229 = arith.constant 0 : index
    %339 = vector.load %arg4[%c0_227, %c37, %c0_228, %c0_229] : memref<1x100x8x128xf32, #tpu.memory_space<vmem>>, vector<1x1x8x128xf32>
    %340 = vector.shape_cast %339 : vector<1x1x8x128xf32> to vector<8x128xf32>
    %341 = arith.mulf %338, %340 : vector<8x128xf32>
    %342 = arith.addf %333, %341 : vector<8x128xf32>
    %c0_230 = arith.constant 0 : index
    %c87 = arith.constant 87 : index
    %c0_231 = arith.constant 0 : index
    %c0_232 = arith.constant 0 : index
    %343 = vector.load %arg4[%c0_230, %c87, %c0_231, %c0_232] : memref<1x100x8x128xf32, #tpu.memory_space<vmem>>, vector<1x1x8x128xf32>
    %344 = vector.shape_cast %343 : vector<1x1x8x128xf32> to vector<8x128xf32>
    %345 = arith.mulf %338, %344 : vector<8x128xf32>
    %346 = arith.addf %337, %345 : vector<8x128xf32>
    %347 = vector.extract_strided_slice %2 {offsets = [0, 38], sizes = [8, 128], strides = [1, 1]} : vector<8x256xf32> to vector<8x128xf32>
    %c0_233 = arith.constant 0 : index
    %c38 = arith.constant 38 : index
    %c0_234 = arith.constant 0 : index
    %c0_235 = arith.constant 0 : index
    %348 = vector.load %arg4[%c0_233, %c38, %c0_234, %c0_235] : memref<1x100x8x128xf32, #tpu.memory_space<vmem>>, vector<1x1x8x128xf32>
    %349 = vector.shape_cast %348 : vector<1x1x8x128xf32> to vector<8x128xf32>
    %350 = arith.mulf %347, %349 : vector<8x128xf32>
    %351 = arith.addf %342, %350 : vector<8x128xf32>
    %c0_236 = arith.constant 0 : index
    %c88 = arith.constant 88 : index
    %c0_237 = arith.constant 0 : index
    %c0_238 = arith.constant 0 : index
    %352 = vector.load %arg4[%c0_236, %c88, %c0_237, %c0_238] : memref<1x100x8x128xf32, #tpu.memory_space<vmem>>, vector<1x1x8x128xf32>
    %353 = vector.shape_cast %352 : vector<1x1x8x128xf32> to vector<8x128xf32>
    %354 = arith.mulf %347, %353 : vector<8x128xf32>
    %355 = arith.addf %346, %354 : vector<8x128xf32>
    %356 = vector.extract_strided_slice %2 {offsets = [0, 39], sizes = [8, 128], strides = [1, 1]} : vector<8x256xf32> to vector<8x128xf32>
    %c0_239 = arith.constant 0 : index
    %c39 = arith.constant 39 : index
    %c0_240 = arith.constant 0 : index
    %c0_241 = arith.constant 0 : index
    %357 = vector.load %arg4[%c0_239, %c39, %c0_240, %c0_241] : memref<1x100x8x128xf32, #tpu.memory_space<vmem>>, vector<1x1x8x128xf32>
    %358 = vector.shape_cast %357 : vector<1x1x8x128xf32> to vector<8x128xf32>
    %359 = arith.mulf %356, %358 : vector<8x128xf32>
    %360 = arith.addf %351, %359 : vector<8x128xf32>
    %c0_242 = arith.constant 0 : index
    %c89 = arith.constant 89 : index
    %c0_243 = arith.constant 0 : index
    %c0_244 = arith.constant 0 : index
    %361 = vector.load %arg4[%c0_242, %c89, %c0_243, %c0_244] : memref<1x100x8x128xf32, #tpu.memory_space<vmem>>, vector<1x1x8x128xf32>
    %362 = vector.shape_cast %361 : vector<1x1x8x128xf32> to vector<8x128xf32>
    %363 = arith.mulf %356, %362 : vector<8x128xf32>
    %364 = arith.addf %355, %363 : vector<8x128xf32>
    %365 = vector.extract_strided_slice %2 {offsets = [0, 40], sizes = [8, 128], strides = [1, 1]} : vector<8x256xf32> to vector<8x128xf32>
    %c0_245 = arith.constant 0 : index
    %c40 = arith.constant 40 : index
    %c0_246 = arith.constant 0 : index
    %c0_247 = arith.constant 0 : index
    %366 = vector.load %arg4[%c0_245, %c40, %c0_246, %c0_247] : memref<1x100x8x128xf32, #tpu.memory_space<vmem>>, vector<1x1x8x128xf32>
    %367 = vector.shape_cast %366 : vector<1x1x8x128xf32> to vector<8x128xf32>
    %368 = arith.mulf %365, %367 : vector<8x128xf32>
    %369 = arith.addf %360, %368 : vector<8x128xf32>
    %c0_248 = arith.constant 0 : index
    %c90 = arith.constant 90 : index
    %c0_249 = arith.constant 0 : index
    %c0_250 = arith.constant 0 : index
    %370 = vector.load %arg4[%c0_248, %c90, %c0_249, %c0_250] : memref<1x100x8x128xf32, #tpu.memory_space<vmem>>, vector<1x1x8x128xf32>
    %371 = vector.shape_cast %370 : vector<1x1x8x128xf32> to vector<8x128xf32>
    %372 = arith.mulf %365, %371 : vector<8x128xf32>
    %373 = arith.addf %364, %372 : vector<8x128xf32>
    %374 = vector.extract_strided_slice %2 {offsets = [0, 41], sizes = [8, 128], strides = [1, 1]} : vector<8x256xf32> to vector<8x128xf32>
    %c0_251 = arith.constant 0 : index
    %c41 = arith.constant 41 : index
    %c0_252 = arith.constant 0 : index
    %c0_253 = arith.constant 0 : index
    %375 = vector.load %arg4[%c0_251, %c41, %c0_252, %c0_253] : memref<1x100x8x128xf32, #tpu.memory_space<vmem>>, vector<1x1x8x128xf32>
    %376 = vector.shape_cast %375 : vector<1x1x8x128xf32> to vector<8x128xf32>
    %377 = arith.mulf %374, %376 : vector<8x128xf32>
    %378 = arith.addf %369, %377 : vector<8x128xf32>
    %c0_254 = arith.constant 0 : index
    %c91 = arith.constant 91 : index
    %c0_255 = arith.constant 0 : index
    %c0_256 = arith.constant 0 : index
    %379 = vector.load %arg4[%c0_254, %c91, %c0_255, %c0_256] : memref<1x100x8x128xf32, #tpu.memory_space<vmem>>, vector<1x1x8x128xf32>
    %380 = vector.shape_cast %379 : vector<1x1x8x128xf32> to vector<8x128xf32>
    %381 = arith.mulf %374, %380 : vector<8x128xf32>
    %382 = arith.addf %373, %381 : vector<8x128xf32>
    %383 = vector.extract_strided_slice %2 {offsets = [0, 42], sizes = [8, 128], strides = [1, 1]} : vector<8x256xf32> to vector<8x128xf32>
    %c0_257 = arith.constant 0 : index
    %c42 = arith.constant 42 : index
    %c0_258 = arith.constant 0 : index
    %c0_259 = arith.constant 0 : index
    %384 = vector.load %arg4[%c0_257, %c42, %c0_258, %c0_259] : memref<1x100x8x128xf32, #tpu.memory_space<vmem>>, vector<1x1x8x128xf32>
    %385 = vector.shape_cast %384 : vector<1x1x8x128xf32> to vector<8x128xf32>
    %386 = arith.mulf %383, %385 : vector<8x128xf32>
    %387 = arith.addf %378, %386 : vector<8x128xf32>
    %c0_260 = arith.constant 0 : index
    %c92 = arith.constant 92 : index
    %c0_261 = arith.constant 0 : index
    %c0_262 = arith.constant 0 : index
    %388 = vector.load %arg4[%c0_260, %c92, %c0_261, %c0_262] : memref<1x100x8x128xf32, #tpu.memory_space<vmem>>, vector<1x1x8x128xf32>
    %389 = vector.shape_cast %388 : vector<1x1x8x128xf32> to vector<8x128xf32>
    %390 = arith.mulf %383, %389 : vector<8x128xf32>
    %391 = arith.addf %382, %390 : vector<8x128xf32>
    %392 = vector.extract_strided_slice %2 {offsets = [0, 43], sizes = [8, 128], strides = [1, 1]} : vector<8x256xf32> to vector<8x128xf32>
    %c0_263 = arith.constant 0 : index
    %c43 = arith.constant 43 : index
    %c0_264 = arith.constant 0 : index
    %c0_265 = arith.constant 0 : index
    %393 = vector.load %arg4[%c0_263, %c43, %c0_264, %c0_265] : memref<1x100x8x128xf32, #tpu.memory_space<vmem>>, vector<1x1x8x128xf32>
    %394 = vector.shape_cast %393 : vector<1x1x8x128xf32> to vector<8x128xf32>
    %395 = arith.mulf %392, %394 : vector<8x128xf32>
    %396 = arith.addf %387, %395 : vector<8x128xf32>
    %c0_266 = arith.constant 0 : index
    %c93 = arith.constant 93 : index
    %c0_267 = arith.constant 0 : index
    %c0_268 = arith.constant 0 : index
    %397 = vector.load %arg4[%c0_266, %c93, %c0_267, %c0_268] : memref<1x100x8x128xf32, #tpu.memory_space<vmem>>, vector<1x1x8x128xf32>
    %398 = vector.shape_cast %397 : vector<1x1x8x128xf32> to vector<8x128xf32>
    %399 = arith.mulf %392, %398 : vector<8x128xf32>
    %400 = arith.addf %391, %399 : vector<8x128xf32>
    %401 = vector.extract_strided_slice %2 {offsets = [0, 44], sizes = [8, 128], strides = [1, 1]} : vector<8x256xf32> to vector<8x128xf32>
    %c0_269 = arith.constant 0 : index
    %c44 = arith.constant 44 : index
    %c0_270 = arith.constant 0 : index
    %c0_271 = arith.constant 0 : index
    %402 = vector.load %arg4[%c0_269, %c44, %c0_270, %c0_271] : memref<1x100x8x128xf32, #tpu.memory_space<vmem>>, vector<1x1x8x128xf32>
    %403 = vector.shape_cast %402 : vector<1x1x8x128xf32> to vector<8x128xf32>
    %404 = arith.mulf %401, %403 : vector<8x128xf32>
    %405 = arith.addf %396, %404 : vector<8x128xf32>
    %c0_272 = arith.constant 0 : index
    %c94 = arith.constant 94 : index
    %c0_273 = arith.constant 0 : index
    %c0_274 = arith.constant 0 : index
    %406 = vector.load %arg4[%c0_272, %c94, %c0_273, %c0_274] : memref<1x100x8x128xf32, #tpu.memory_space<vmem>>, vector<1x1x8x128xf32>
    %407 = vector.shape_cast %406 : vector<1x1x8x128xf32> to vector<8x128xf32>
    %408 = arith.mulf %401, %407 : vector<8x128xf32>
    %409 = arith.addf %400, %408 : vector<8x128xf32>
    %410 = vector.extract_strided_slice %2 {offsets = [0, 45], sizes = [8, 128], strides = [1, 1]} : vector<8x256xf32> to vector<8x128xf32>
    %c0_275 = arith.constant 0 : index
    %c45 = arith.constant 45 : index
    %c0_276 = arith.constant 0 : index
    %c0_277 = arith.constant 0 : index
    %411 = vector.load %arg4[%c0_275, %c45, %c0_276, %c0_277] : memref<1x100x8x128xf32, #tpu.memory_space<vmem>>, vector<1x1x8x128xf32>
    %412 = vector.shape_cast %411 : vector<1x1x8x128xf32> to vector<8x128xf32>
    %413 = arith.mulf %410, %412 : vector<8x128xf32>
    %414 = arith.addf %405, %413 : vector<8x128xf32>
    %c0_278 = arith.constant 0 : index
    %c95 = arith.constant 95 : index
    %c0_279 = arith.constant 0 : index
    %c0_280 = arith.constant 0 : index
    %415 = vector.load %arg4[%c0_278, %c95, %c0_279, %c0_280] : memref<1x100x8x128xf32, #tpu.memory_space<vmem>>, vector<1x1x8x128xf32>
    %416 = vector.shape_cast %415 : vector<1x1x8x128xf32> to vector<8x128xf32>
    %417 = arith.mulf %410, %416 : vector<8x128xf32>
    %418 = arith.addf %409, %417 : vector<8x128xf32>
    %419 = vector.extract_strided_slice %2 {offsets = [0, 46], sizes = [8, 128], strides = [1, 1]} : vector<8x256xf32> to vector<8x128xf32>
    %c0_281 = arith.constant 0 : index
    %c46 = arith.constant 46 : index
    %c0_282 = arith.constant 0 : index
    %c0_283 = arith.constant 0 : index
    %420 = vector.load %arg4[%c0_281, %c46, %c0_282, %c0_283] : memref<1x100x8x128xf32, #tpu.memory_space<vmem>>, vector<1x1x8x128xf32>
    %421 = vector.shape_cast %420 : vector<1x1x8x128xf32> to vector<8x128xf32>
    %422 = arith.mulf %419, %421 : vector<8x128xf32>
    %423 = arith.addf %414, %422 : vector<8x128xf32>
    %c0_284 = arith.constant 0 : index
    %c96 = arith.constant 96 : index
    %c0_285 = arith.constant 0 : index
    %c0_286 = arith.constant 0 : index
    %424 = vector.load %arg4[%c0_284, %c96, %c0_285, %c0_286] : memref<1x100x8x128xf32, #tpu.memory_space<vmem>>, vector<1x1x8x128xf32>
    %425 = vector.shape_cast %424 : vector<1x1x8x128xf32> to vector<8x128xf32>
    %426 = arith.mulf %419, %425 : vector<8x128xf32>
    %427 = arith.addf %418, %426 : vector<8x128xf32>
    %428 = vector.extract_strided_slice %2 {offsets = [0, 47], sizes = [8, 128], strides = [1, 1]} : vector<8x256xf32> to vector<8x128xf32>
    %c0_287 = arith.constant 0 : index
    %c47 = arith.constant 47 : index
    %c0_288 = arith.constant 0 : index
    %c0_289 = arith.constant 0 : index
    %429 = vector.load %arg4[%c0_287, %c47, %c0_288, %c0_289] : memref<1x100x8x128xf32, #tpu.memory_space<vmem>>, vector<1x1x8x128xf32>
    %430 = vector.shape_cast %429 : vector<1x1x8x128xf32> to vector<8x128xf32>
    %431 = arith.mulf %428, %430 : vector<8x128xf32>
    %432 = arith.addf %423, %431 : vector<8x128xf32>
    %c0_290 = arith.constant 0 : index
    %c97 = arith.constant 97 : index
    %c0_291 = arith.constant 0 : index
    %c0_292 = arith.constant 0 : index
    %433 = vector.load %arg4[%c0_290, %c97, %c0_291, %c0_292] : memref<1x100x8x128xf32, #tpu.memory_space<vmem>>, vector<1x1x8x128xf32>
    %434 = vector.shape_cast %433 : vector<1x1x8x128xf32> to vector<8x128xf32>
    %435 = arith.mulf %428, %434 : vector<8x128xf32>
    %436 = arith.addf %427, %435 : vector<8x128xf32>
    %437 = vector.extract_strided_slice %2 {offsets = [0, 48], sizes = [8, 128], strides = [1, 1]} : vector<8x256xf32> to vector<8x128xf32>
    %c0_293 = arith.constant 0 : index
    %c48 = arith.constant 48 : index
    %c0_294 = arith.constant 0 : index
    %c0_295 = arith.constant 0 : index
    %438 = vector.load %arg4[%c0_293, %c48, %c0_294, %c0_295] : memref<1x100x8x128xf32, #tpu.memory_space<vmem>>, vector<1x1x8x128xf32>
    %439 = vector.shape_cast %438 : vector<1x1x8x128xf32> to vector<8x128xf32>
    %440 = arith.mulf %437, %439 : vector<8x128xf32>
    %441 = arith.addf %432, %440 : vector<8x128xf32>
    %c0_296 = arith.constant 0 : index
    %c98 = arith.constant 98 : index
    %c0_297 = arith.constant 0 : index
    %c0_298 = arith.constant 0 : index
    %442 = vector.load %arg4[%c0_296, %c98, %c0_297, %c0_298] : memref<1x100x8x128xf32, #tpu.memory_space<vmem>>, vector<1x1x8x128xf32>
    %443 = vector.shape_cast %442 : vector<1x1x8x128xf32> to vector<8x128xf32>
    %444 = arith.mulf %437, %443 : vector<8x128xf32>
    %445 = arith.addf %436, %444 : vector<8x128xf32>
    %446 = vector.extract_strided_slice %2 {offsets = [0, 49], sizes = [8, 128], strides = [1, 1]} : vector<8x256xf32> to vector<8x128xf32>
    %c0_299 = arith.constant 0 : index
    %c49 = arith.constant 49 : index
    %c0_300 = arith.constant 0 : index
    %c0_301 = arith.constant 0 : index
    %447 = vector.load %arg4[%c0_299, %c49, %c0_300, %c0_301] : memref<1x100x8x128xf32, #tpu.memory_space<vmem>>, vector<1x1x8x128xf32>
    %448 = vector.shape_cast %447 : vector<1x1x8x128xf32> to vector<8x128xf32>
    %449 = arith.mulf %446, %448 : vector<8x128xf32>
    %450 = arith.addf %441, %449 : vector<8x128xf32>
    %c0_302 = arith.constant 0 : index
    %c99 = arith.constant 99 : index
    %c0_303 = arith.constant 0 : index
    %c0_304 = arith.constant 0 : index
    %451 = vector.load %arg4[%c0_302, %c99, %c0_303, %c0_304] : memref<1x100x8x128xf32, #tpu.memory_space<vmem>>, vector<1x1x8x128xf32>
    %452 = vector.shape_cast %451 : vector<1x1x8x128xf32> to vector<8x128xf32>
    %453 = arith.mulf %446, %452 : vector<8x128xf32>
    %454 = arith.addf %445, %453 : vector<8x128xf32>
    %cst_305 = arith.constant 0.000000e+00 : f32
    %455 = vector.broadcast %cst_305 : f32 to vector<8x128xf32>
    %456 = arith.maximumf %450, %455 : vector<8x128xf32>
    %c0_306 = arith.constant 0 : index
    %c0_307 = arith.constant 0 : index
    %c0_308 = arith.constant 0 : index
    %457 = vector.load %arg5[%c0_306, %c0_307, %c0_308] : memref<2x8x128xf32, #tpu.memory_space<vmem>>, vector<1x8x128xf32>
    %458 = vector.shape_cast %457 : vector<1x8x128xf32> to vector<8x128xf32>
    %459 = vector.shape_cast %456 : vector<8x128xf32> to vector<1x8x128xf32>
    tpu.vector_store %arg5[%c0_306, %c0_307, %c0_308], %459 {strides = array<i32>} : memref<2x8x128xf32, #tpu.memory_space<vmem>>, vector<1x8x128xf32>,
    %cst_309 = arith.constant 0.000000e+00 : f32
    %460 = vector.broadcast %cst_309 : f32 to vector<8x128xf32>
    %461 = arith.maximumf %454, %460 : vector<8x128xf32>
    %c1_310 = arith.constant 1 : index
    %c0_311 = arith.constant 0 : index
    %c0_312 = arith.constant 0 : index
    %462 = vector.load %arg5[%c1_310, %c0_311, %c0_312] : memref<2x8x128xf32, #tpu.memory_space<vmem>>, vector<1x8x128xf32>
    %463 = vector.shape_cast %462 : vector<1x8x128xf32> to vector<8x128xf32>
    %464 = vector.shape_cast %461 : vector<8x128xf32> to vector<1x8x128xf32>
    tpu.vector_store %arg5[%c1_310, %c0_311, %c0_312], %464 {strides = array<i32>} : memref<2x8x128xf32, #tpu.memory_space<vmem>>, vector<1x8x128xf32>,
    return
  }
  func.func @transform_0(%arg0: i32, %arg1: i32) -> (i32, i32) {
    %c0_i32 = arith.constant 0 : i32
    return %arg0, %arg1 : i32, i32
  }
  func.func @transform_1(%arg0: i32, %arg1: i32) -> (i32, i32) {
    %c1_i32 = arith.constant 1 : i32
    %0 = arith.addi %arg1, %c1_i32 : i32
    %c1_i32_0 = arith.constant 1 : i32
    %1 = arith.muli %0, %c1_i32_0 : i32
    %c0_i32 = arith.constant 0 : i32
    return %arg0, %1 : i32, i32
  }
  func.func @transform_2(%arg0: i32, %arg1: i32) -> (i32, i32, i32, i32) {
    %c0_i32 = arith.constant 0 : i32
    %c0_i32_0 = arith.constant 0 : i32
    %c0_i32_1 = arith.constant 0 : i32
    %c0_i32_2 = arith.constant 0 : i32
    return %arg0, %c0_i32, %c0_i32_0, %c0_i32_1 : i32, i32, i32, i32
  }
  func.func @transform_3(%arg0: i32, %arg1: i32) -> (i32, i32, i32) {
    %c0_i32 = arith.constant 0 : i32
    %c0_i32_0 = arith.constant 0 : i32
    return %c0_i32, %arg0, %arg1 : i32, i32, i32
  }
}

</mosaic_0001>

<llo_original>
// kernel: tpu_custom_call.1
$region0: #{tpu_custom_call.1}
  #allocation0 [shape = 'u32[]', space=smem, size = 0x4, offset = 0x4, fixed_abs, tag = 'smem constant byte address 0x4 - core index']
  #allocation1 [shape = 'u32[72,128]{1,0:T(1,128)}', space=vmem, size = 0x9000, scoped, tag = 'internal scratch']
  %s0 = inlined_call_operand.hbm [shape: f32[8,256], index: 0, kind: input, shape index: {}]
  %s1 = inlined_call_operand.hbm [shape: f32[8,256], index: 1, kind: input, shape index: {}]
  %s2 = inlined_call_operand.hbm [shape: f32[1,100,8,128], index: 2, kind: input, shape index: {}]
  %s3 = inlined_call_operand.hbm [shape: f32[2,8,128], index: 3, kind: output, shape index: {}]
  %s4 = sld [smem:[#allocation0]]
  $region34: #{tpu_custom_call.1} parent=0
    _
  %s6 = ssub.s32 1, %s4
  %s7 = scalar_select 0, %s6, %s4
  $region1: #{tpu_custom_call.1} parent=0
    #allocation2 [shape = 'u8[4096]{0}', space=vmem, size = 0x1000, scoped, tag = 'input window, operand 0, single buffered']
    #allocation3 [shape = 's32[1]{0}', space=sflag, size = 0x4, scoped, tag = 'scoped memory for tpu_custom_call.1']
    #allocation4 [shape = 's32[1]{0}', space=sflag, size = 0x4, scoped, tag = 'scoped memory for tpu_custom_call.1']
    #allocation5 [shape = 'u8[4096]{0}', space=vmem, size = 0x1000, scoped, tag = 'input window, operand 1, single buffered']
    #allocation6 [shape = 's32[1]{0}', space=sflag, size = 0x4, scoped, tag = 'scoped memory for tpu_custom_call.1']
    #allocation7 [shape = 'u8[409600]{0}', space=vmem, size = 0x64000, scoped, tag = 'input window, operand 2, single buffered']
    #allocation8 [shape = 'u8[8192]{0}', space=vmem, size = 0x2000, scoped, tag = 'output window, operand 0, single buffered']
    %8 = vsyncpa [#allocation3], 0
    %9 = vsyncpa [#allocation6], 0
    %10 = vsyncpa [#allocation4], 0
    // Predicated region
    $region2: #{tpu_custom_call.1} parent=1 // pred_check
      _
    $region3: #{tpu_custom_call.1} parent=1 // pred_check_branch
      %12 = sbr.rel (0) target = $region5
    $region4: #{tpu_custom_call.1} parent=1 // pred_region
      %14 = vsyncadd [#allocation3], 0
      %s16 = sshll.u32 %s0, 4
      %s17 = int_to_ptr.hbm [resolvable:$true] %s16
      %s18 = sshll.u32 [#allocation2], 4
      %s19 = int_to_ptr.vmem [resolvable:$true] %s18
      %21 = dma.hbm_to_vmem [thread:$0]  %s17, 128, %s19, [#allocation3]
    $region5: #{tpu_custom_call.1} parent=1 // pred_fallthru
      _
    // Predicated region
    $region6: #{tpu_custom_call.1} parent=1 // pred_check
      _
    $region7: #{tpu_custom_call.1} parent=1 // pred_check_branch
      %23 = sbr.rel (0) target = $region9
    $region8: #{tpu_custom_call.1} parent=1 // pred_region
      %s24 = sadd.s32 0, 1
      %26 = vsyncadd [#allocation6], 0
      %s27 = smul.addr %s24, 8
      %s28 = scalar_lea.hbm %s1, %s27
      %s30 = sshll.u32 %s28, 4
      %s31 = int_to_ptr.hbm [resolvable:$true] %s30
      %s32 = sshll.u32 [#allocation5], 4
      %s33 = int_to_ptr.vmem [resolvable:$true] %s32
      %35 = dma.hbm_to_vmem [thread:$0]  %s31, 128, %s33, [#allocation6]
    $region9: #{tpu_custom_call.1} parent=1 // pred_fallthru
      _
    // Predicated region
    $region10: #{tpu_custom_call.1} parent=1 // pred_check
      _
    $region11: #{tpu_custom_call.1} parent=1 // pred_check_branch
      %37 = sbr.rel (0) target = $region13
    $region12: #{tpu_custom_call.1} parent=1 // pred_region
      %39 = vsyncadd [#allocation6], 0
      %s40 = sshll.u32 %s2, 4
      %s41 = int_to_ptr.hbm [resolvable:$true] %s40
      %s42 = sshll.u32 [#allocation7], 4
      %s43 = int_to_ptr.vmem [resolvable:$true] %s42
      %48 = dma.hbm_to_vmem [thread:$0]  %s41, 12800, %s43, [#allocation6], 128, 128, 8
    $region13: #{tpu_custom_call.1} parent=1 // pred_fallthru
      _
    // Predicated region
    $region14: #{tpu_custom_call.1} parent=1 // pred_check
      _
    $region15: #{tpu_custom_call.1} parent=1 // pred_check_branch
      %50 = sbr.rel (0) target = $region17
    $region16: #{tpu_custom_call.1} parent=1 // pred_region
      %52 = dma.done [#allocation3], 128
    $region17: #{tpu_custom_call.1} parent=1 // pred_fallthru
      _
    // Predicated region
    $region18: #{tpu_custom_call.1} parent=1 // pred_check
      _
    $region19: #{tpu_custom_call.1} parent=1 // pred_check_branch
      %54 = sbr.rel (0) target = $region21
    $region20: #{tpu_custom_call.1} parent=1 // pred_region
      %56 = dma.done [#allocation6], 128
    $region21: #{tpu_custom_call.1} parent=1 // pred_fallthru
      _
    // Predicated region
    $region22: #{tpu_custom_call.1} parent=1 // pred_check
      _
    $region23: #{tpu_custom_call.1} parent=1 // pred_check_branch
      %58 = sbr.rel (0) target = $region25
    $region24: #{tpu_custom_call.1} parent=1 // pred_region
      %60 = dma.done [#allocation6], 12800
    $region25: #{tpu_custom_call.1} parent=1 // pred_fallthru
      _
    %s61 = sadd.s32 0, 1
    %v62 = vld [vmem:[#allocation2] sm:$0xff]
    %v63 = vld [vmem:[#allocation5] sm:$0xff]
    %v64 = vld [vmem:[#allocation7] sm:$0xff]
    %v65 = vmul.f32 %v62, %v64
    %v66 = vadd.f32 %v65, 0.0
    %s67 = scalar_lea.vmem [#allocation7], 400
    %v68 = vld [vmem:[%s67] sm:$0xff]
    %v69 = vmul.f32 %v62, %v68
    %v70 = vadd.f32 %v69, 0.0
    %s71 = scalar_lea.vmem [#allocation7], 8
    %v72 = vld [vmem:[%s71] sm:$0xff]
    %74 = vrot.lane.b32.xlu0 %v72, 1
    %v75 = vpop.permute.xlu0 %74
    %v77 = vmul.f32 %v62, %v75
    %v78 = vmul.f32 %v63, %v75
    %81 = vrot.lane.b32.xlu0 %v77, 127
    %v82 = vpop.permute.xlu0 %81
    %83 = vrot.lane.b32.xlu0 %v78, 127
    %v84 = vpop.permute.xlu0 %83
    %vm85 = vcmask 1039360
    %v86 = vsel %vm85, %v82, %v84
    %v88 = vadd.f32 %v66, %v86
    %s89 = scalar_lea.vmem [#allocation7], 408
    %v90 = vld [vmem:[%s89] sm:$0xff]
    %92 = vrot.lane.b32.xlu0 %v90, 1
    %v93 = vpop.permute.xlu0 %92
    %v95 = vmul.f32 %v62, %v93
    %v96 = vmul.f32 %v63, %v93
    %99 = vrot.lane.b32.xlu0 %v95, 127
    %v100 = vpop.permute.xlu0 %99
    %101 = vrot.lane.b32.xlu0 %v96, 127
    %v102 = vpop.permute.xlu0 %101
    %v103 = vsel %vm85, %v100, %v102
    %v105 = vadd.f32 %v70, %v103
    %s106 = scalar_lea.vmem [#allocation7], 16
    %v107 = vld [vmem:[%s106] sm:$0xff]
    %109 = vrot.lane.b32.xlu0 %v107, 2
    %v110 = vpop.permute.xlu0 %109
    %v112 = vmul.f32 %v62, %v110
    %v113 = vmul.f32 %v63, %v110
    %116 = vrot.lane.b32.xlu0 %v112, 126
    %v117 = vpop.permute.xlu0 %116
    %118 = vrot.lane.b32.xlu0 %v113, 126
    %v119 = vpop.permute.xlu0 %118
    %vm120 = vcmask 1031168
    %v121 = vsel %vm120, %v117, %v119
    %v123 = vadd.f32 %v88, %v121
    %s124 = scalar_lea.vmem [#allocation7], 416
    %v125 = vld [vmem:[%s124] sm:$0xff]
    %127 = vrot.lane.b32.xlu0 %v125, 2
    %v128 = vpop.permute.xlu0 %127
    %v130 = vmul.f32 %v62, %v128
    %v131 = vmul.f32 %v63, %v128
    %134 = vrot.lane.b32.xlu0 %v130, 126
    %v135 = vpop.permute.xlu0 %134
    %136 = vrot.lane.b32.xlu0 %v131, 126
    %v137 = vpop.permute.xlu0 %136
    %v138 = vsel %vm120, %v135, %v137
    %v140 = vadd.f32 %v105, %v138
    %s141 = scalar_lea.vmem [#allocation7], 24
    %v142 = vld [vmem:[%s141] sm:$0xff]
    %144 = vrot.lane.b32.xlu0 %v142, 3
    %v145 = vpop.permute.xlu0 %144
    %v147 = vmul.f32 %v62, %v145
    %v148 = vmul.f32 %v63, %v145
    %151 = vrot.lane.b32.xlu0 %v147, 125
    %v152 = vpop.permute.xlu0 %151
    %153 = vrot.lane.b32.xlu0 %v148, 125
    %v154 = vpop.permute.xlu0 %153
    %vm155 = vcmask 1022976
    %v156 = vsel %vm155, %v152, %v154
    %v158 = vadd.f32 %v123, %v156
    %s159 = scalar_lea.vmem [#allocation7], 424
    %v160 = vld [vmem:[%s159] sm:$0xff]
    %162 = vrot.lane.b32.xlu0 %v160, 3
    %v163 = vpop.permute.xlu0 %162
    %v165 = vmul.f32 %v62, %v163
    %v166 = vmul.f32 %v63, %v163
    %169 = vrot.lane.b32.xlu0 %v165, 125
    %v170 = vpop.permute.xlu0 %169
    %171 = vrot.lane.b32.xlu0 %v166, 125
    %v172 = vpop.permute.xlu0 %171
    %v173 = vsel %vm155, %v170, %v172
    %v175 = vadd.f32 %v140, %v173
    %s176 = scalar_lea.vmem [#allocation7], 32
    %v177 = vld [vmem:[%s176] sm:$0xff]
    %179 = vrot.lane.b32.xlu0 %v177, 4
    %v180 = vpop.permute.xlu0 %179
    %v182 = vmul.f32 %v62, %v180
    %v183 = vmul.f32 %v63, %v180
    %186 = vrot.lane.b32.xlu0 %v182, 124
    %v187 = vpop.permute.xlu0 %186
    %188 = vrot.lane.b32.xlu0 %v183, 124
    %v189 = vpop.permute.xlu0 %188
    %vm190 = vcmask 1014784
    %v191 = vsel %vm190, %v187, %v189
    %v193 = vadd.f32 %v158, %v191
    %s194 = scalar_lea.vmem [#allocation7], 432
    %v195 = vld [vmem:[%s194] sm:$0xff]
    %197 = vrot.lane.b32.xlu0 %v195, 4
    %v198 = vpop.permute.xlu0 %197
    %v200 = vmul.f32 %v62, %v198
    %v201 = vmul.f32 %v63, %v198
    %204 = vrot.lane.b32.xlu0 %v200, 124
    %v205 = vpop.permute.xlu0 %204
    %206 = vrot.lane.b32.xlu0 %v201, 124
    %v207 = vpop.permute.xlu0 %206
    %v208 = vsel %vm190, %v205, %v207
    %v210 = vadd.f32 %v175, %v208
    %s211 = scalar_lea.vmem [#allocation7], 40
    %v212 = vld [vmem:[%s211] sm:$0xff]
    %214 = vrot.lane.b32.xlu0 %v212, 5
    %v215 = vpop.permute.xlu0 %214
    %v217 = vmul.f32 %v62, %v215
    %v218 = vmul.f32 %v63, %v215
    %221 = vrot.lane.b32.xlu0 %v217, 123
    %v222 = vpop.permute.xlu0 %221
    %223 = vrot.lane.b32.xlu0 %v218, 123
    %v224 = vpop.permute.xlu0 %223
    %vm225 = vcmask 1006592
    %v226 = vsel %vm225, %v222, %v224
    %v228 = vadd.f32 %v193, %v226
    %s229 = scalar_lea.vmem [#allocation7], 440
    %v230 = vld [vmem:[%s229] sm:$0xff]
    %232 = vrot.lane.b32.xlu0 %v230, 5
    %v233 = vpop.permute.xlu0 %232
    %v235 = vmul.f32 %v62, %v233
    %v236 = vmul.f32 %v63, %v233
    %239 = vrot.lane.b32.xlu0 %v235, 123
    %v240 = vpop.permute.xlu0 %239
    %241 = vrot.lane.b32.xlu0 %v236, 123
    %v242 = vpop.permute.xlu0 %241
    %v243 = vsel %vm225, %v240, %v242
    %v245 = vadd.f32 %v210, %v243
    %s246 = scalar_lea.vmem [#allocation7], 48
    %v247 = vld [vmem:[%s246] sm:$0xff]
    %249 = vrot.lane.b32.xlu0 %v247, 6
    %v250 = vpop.permute.xlu0 %249
    %v252 = vmul.f32 %v62, %v250
    %v253 = vmul.f32 %v63, %v250
    %256 = vrot.lane.b32.xlu0 %v252, 122
    %v257 = vpop.permute.xlu0 %256
    %258 = vrot.lane.b32.xlu0 %v253, 122
    %v259 = vpop.permute.xlu0 %258
    %vm260 = vcmask 998400
    %v261 = vsel %vm260, %v257, %v259
    %v263 = vadd.f32 %v228, %v261
    %s264 = scalar_lea.vmem [#allocation7], 448
    %v265 = vld [vmem:[%s264] sm:$0xff]
    %267 = vrot.lane.b32.xlu0 %v265, 6
    %v268 = vpop.permute.xlu0 %267
    %v270 = vmul.f32 %v62, %v268
    %v271 = vmul.f32 %v63, %v268
    %274 = vrot.lane.b32.xlu0 %v270, 122
    %v275 = vpop.permute.xlu0 %274
    %276 = vrot.lane.b32.xlu0 %v271, 122
    %v277 = vpop.permute.xlu0 %276
    %v278 = vsel %vm260, %v275, %v277
    %v280 = vadd.f32 %v245, %v278
    %s281 = scalar_lea.vmem [#allocation7], 56
    %v282 = vld [vmem:[%s281] sm:$0xff]
    %284 = vrot.lane.b32.xlu0 %v282, 7
    %v285 = vpop.permute.xlu0 %284
    %v287 = vmul.f32 %v62, %v285
    %v288 = vmul.f32 %v63, %v285
    %291 = vrot.lane.b32.xlu0 %v287, 121
    %v292 = vpop.permute.xlu0 %291
    %293 = vrot.lane.b32.xlu0 %v288, 121
    %v294 = vpop.permute.xlu0 %293
    %vm295 = vcmask 990208
    %v296 = vsel %vm295, %v292, %v294
    %v298 = vadd.f32 %v263, %v296
    %s299 = scalar_lea.vmem [#allocation7], 456
    %v300 = vld [vmem:[%s299] sm:$0xff]
    %302 = vrot.lane.b32.xlu0 %v300, 7
    %v303 = vpop.permute.xlu0 %302
    %v305 = vmul.f32 %v62, %v303
    %v306 = vmul.f32 %v63, %v303
    %309 = vrot.lane.b32.xlu0 %v305, 121
    %v310 = vpop.permute.xlu0 %309
    %311 = vrot.lane.b32.xlu0 %v306, 121
    %v312 = vpop.permute.xlu0 %311
    %v313 = vsel %vm295, %v310, %v312
    %v315 = vadd.f32 %v280, %v313
    %s316 = scalar_lea.vmem [#allocation7], 64
    %v317 = vld [vmem:[%s316] sm:$0xff]
    %319 = vrot.lane.b32.xlu0 %v317, 8
    %v320 = vpop.permute.xlu0 %319
    %v322 = vmul.f32 %v62, %v320
    %v323 = vmul.f32 %v63, %v320
    %326 = vrot.lane.b32.xlu0 %v322, 120
    %v327 = vpop.permute.xlu0 %326
    %328 = vrot.lane.b32.xlu0 %v323, 120
    %v329 = vpop.permute.xlu0 %328
    %vm330 = vcmask 982016
    %v331 = vsel %vm330, %v327, %v329
    %v333 = vadd.f32 %v298, %v331
    %s334 = scalar_lea.vmem [#allocation7], 464
    %v335 = vld [vmem:[%s334] sm:$0xff]
    %337 = vrot.lane.b32.xlu0 %v335, 8
    %v338 = vpop.permute.xlu0 %337
    %v340 = vmul.f32 %v62, %v338
    %v341 = vmul.f32 %v63, %v338
    %344 = vrot.lane.b32.xlu0 %v340, 120
    %v345 = vpop.permute.xlu0 %344
    %346 = vrot.lane.b32.xlu0 %v341, 120
    %v347 = vpop.permute.xlu0 %346
    %v348 = vsel %vm330, %v345, %v347
    %v350 = vadd.f32 %v315, %v348
    %s351 = scalar_lea.vmem [#allocation7], 72
    %v352 = vld [vmem:[%s351] sm:$0xff]
    %354 = vrot.lane.b32.xlu0 %v352, 9
    %v355 = vpop.permute.xlu0 %354
    %v357 = vmul.f32 %v62, %v355
    %v358 = vmul.f32 %v63, %v355
    %361 = vrot.lane.b32.xlu0 %v357, 119
    %v362 = vpop.permute.xlu0 %361
    %363 = vrot.lane.b32.xlu0 %v358, 119
    %v364 = vpop.permute.xlu0 %363
    %vm365 = vcmask 973824
    %v366 = vsel %vm365, %v362, %v364
    %v368 = vadd.f32 %v333, %v366
    %s369 = scalar_lea.vmem [#allocation7], 472
    %v370 = vld [vmem:[%s369] sm:$0xff]
    %372 = vrot.lane.b32.xlu0 %v370, 9
    %v373 = vpop.permute.xlu0 %372
    %v375 = vmul.f32 %v62, %v373
    %v376 = vmul.f32 %v63, %v373
    %379 = vrot.lane.b32.xlu0 %v375, 119
    %v380 = vpop.permute.xlu0 %379
    %381 = vrot.lane.b32.xlu0 %v376, 119
    %v382 = vpop.permute.xlu0 %381
    %v383 = vsel %vm365, %v380, %v382
    %v385 = vadd.f32 %v350, %v383
    %s386 = scalar_lea.vmem [#allocation7], 80
    %v387 = vld [vmem:[%s386] sm:$0xff]
    %389 = vrot.lane.b32.xlu0 %v387, 10
    %v390 = vpop.permute.xlu0 %389
    %v392 = vmul.f32 %v62, %v390
    %v393 = vmul.f32 %v63, %v390
    %396 = vrot.lane.b32.xlu0 %v392, 118
    %v397 = vpop.permute.xlu0 %396
    %398 = vrot.lane.b32.xlu0 %v393, 118
    %v399 = vpop.permute.xlu0 %398
    %vm400 = vcmask 965632
    %v401 = vsel %vm400, %v397, %v399
    %v403 = vadd.f32 %v368, %v401
    %s404 = scalar_lea.vmem [#allocation7], 480
    %v405 = vld [vmem:[%s404] sm:$0xff]
    %407 = vrot.lane.b32.xlu0 %v405, 10
    %v408 = vpop.permute.xlu0 %407
    %v410 = vmul.f32 %v62, %v408
    %v411 = vmul.f32 %v63, %v408
    %414 = vrot.lane.b32.xlu0 %v410, 118
    %v415 = vpop.permute.xlu0 %414
    %416 = vrot.lane.b32.xlu0 %v411, 118
    %v417 = vpop.permute.xlu0 %416
    %v418 = vsel %vm400, %v415, %v417
    %v420 = vadd.f32 %v385, %v418
    %s421 = scalar_lea.vmem [#allocation7], 88
    %v422 = vld [vmem:[%s421] sm:$0xff]
    %424 = vrot.lane.b32.xlu0 %v422, 11
    %v425 = vpop.permute.xlu0 %424
    %v427 = vmul.f32 %v62, %v425
    %v428 = vmul.f32 %v63, %v425
    %431 = vrot.lane.b32.xlu0 %v427, 117
    %v432 = vpop.permute.xlu0 %431
    %433 = vrot.lane.b32.xlu0 %v428, 117
    %v434 = vpop.permute.xlu0 %433
    %vm435 = vcmask 957440
    %v436 = vsel %vm435, %v432, %v434
    %v438 = vadd.f32 %v403, %v436
    %s439 = scalar_lea.vmem [#allocation7], 488
    %v440 = vld [vmem:[%s439] sm:$0xff]
    %442 = vrot.lane.b32.xlu0 %v440, 11
    %v443 = vpop.permute.xlu0 %442
    %v445 = vmul.f32 %v62, %v443
    %v446 = vmul.f32 %v63, %v443
    %449 = vrot.lane.b32.xlu0 %v445, 117
    %v450 = vpop.permute.xlu0 %449
    %451 = vrot.lane.b32.xlu0 %v446, 117
    %v452 = vpop.permute.xlu0 %451
    %v453 = vsel %vm435, %v450, %v452
    %v455 = vadd.f32 %v420, %v453
    %s456 = scalar_lea.vmem [#allocation7], 96
    %v457 = vld [vmem:[%s456] sm:$0xff]
    %459 = vrot.lane.b32.xlu0 %v457, 12
    %v460 = vpop.permute.xlu0 %459
    %v462 = vmul.f32 %v62, %v460
    %v463 = vmul.f32 %v63, %v460
    %466 = vrot.lane.b32.xlu0 %v462, 116
    %v467 = vpop.permute.xlu0 %466
    %468 = vrot.lane.b32.xlu0 %v463, 116
    %v469 = vpop.permute.xlu0 %468
    %vm470 = vcmask 949248
    %v471 = vsel %vm470, %v467, %v469
    %v473 = vadd.f32 %v438, %v471
    %s474 = scalar_lea.vmem [#allocation7], 496
    %v475 = vld [vmem:[%s474] sm:$0xff]
    %477 = vrot.lane.b32.xlu0 %v475, 12
    %v478 = vpop.permute.xlu0 %477
    %v480 = vmul.f32 %v62, %v478
    %v481 = vmul.f32 %v63, %v478
    %484 = vrot.lane.b32.xlu0 %v480, 116
    %v485 = vpop.permute.xlu0 %484
    %486 = vrot.lane.b32.xlu0 %v481, 116
    %v487 = vpop.permute.xlu0 %486
    %v488 = vsel %vm470, %v485, %v487
    %v490 = vadd.f32 %v455, %v488
    %s491 = scalar_lea.vmem [#allocation7], 104
    %v492 = vld [vmem:[%s491] sm:$0xff]
    %494 = vrot.lane.b32.xlu0 %v492, 13
    %v495 = vpop.permute.xlu0 %494
    %v497 = vmul.f32 %v62, %v495
    %v498 = vmul.f32 %v63, %v495
    %501 = vrot.lane.b32.xlu0 %v497, 115
    %v502 = vpop.permute.xlu0 %501
    %503 = vrot.lane.b32.xlu0 %v498, 115
    %v504 = vpop.permute.xlu0 %503
    %vm505 = vcmask 941056
    %v506 = vsel %vm505, %v502, %v504
    %v508 = vadd.f32 %v473, %v506
    %s509 = scalar_lea.vmem [#allocation7], 504
    %v510 = vld [vmem:[%s509] sm:$0xff]
    %512 = vrot.lane.b32.xlu0 %v510, 13
    %v513 = vpop.permute.xlu0 %512
    %v515 = vmul.f32 %v62, %v513
    %v516 = vmul.f32 %v63, %v513
    %519 = vrot.lane.b32.xlu0 %v515, 115
    %v520 = vpop.permute.xlu0 %519
    %521 = vrot.lane.b32.xlu0 %v516, 115
    %v522 = vpop.permute.xlu0 %521
    %v523 = vsel %vm505, %v520, %v522
    %v525 = vadd.f32 %v490, %v523
    %s526 = scalar_lea.vmem [#allocation7], 112
    %v527 = vld [vmem:[%s526] sm:$0xff]
    %529 = vrot.lane.b32.xlu0 %v527, 14
    %v530 = vpop.permute.xlu0 %529
    %v532 = vmul.f32 %v62, %v530
    %v533 = vmul.f32 %v63, %v530
    %536 = vrot.lane.b32.xlu0 %v532, 114
    %v537 = vpop.permute.xlu0 %536
    %538 = vrot.lane.b32.xlu0 %v533, 114
    %v539 = vpop.permute.xlu0 %538
    %vm540 = vcmask 932864
    %v541 = vsel %vm540, %v537, %v539
    %v543 = vadd.f32 %v508, %v541
    %s544 = scalar_lea.vmem [#allocation7], 512
    %v545 = vld [vmem:[%s544] sm:$0xff]
    %547 = vrot.lane.b32.xlu0 %v545, 14
    %v548 = vpop.permute.xlu0 %547
    %v550 = vmul.f32 %v62, %v548
    %v551 = vmul.f32 %v63, %v548
    %554 = vrot.lane.b32.xlu0 %v550, 114
    %v555 = vpop.permute.xlu0 %554
    %556 = vrot.lane.b32.xlu0 %v551, 114
    %v557 = vpop.permute.xlu0 %556
    %v558 = vsel %vm540, %v555, %v557
    %v560 = vadd.f32 %v525, %v558
    %s561 = scalar_lea.vmem [#allocation7], 120
    %v562 = vld [vmem:[%s561] sm:$0xff]
    %564 = vrot.lane.b32.xlu0 %v562, 15
    %v565 = vpop.permute.xlu0 %564
    %v567 = vmul.f32 %v62, %v565
    %v568 = vmul.f32 %v63, %v565
    %571 = vrot.lane.b32.xlu0 %v567, 113
    %v572 = vpop.permute.xlu0 %571
    %573 = vrot.lane.b32.xlu0 %v568, 113
    %v574 = vpop.permute.xlu0 %573
    %vm575 = vcmask 924672
    %v576 = vsel %vm575, %v572, %v574
    %v578 = vadd.f32 %v543, %v576
    %s579 = scalar_lea.vmem [#allocation7], 520
    %v580 = vld [vmem:[%s579] sm:$0xff]
    %582 = vrot.lane.b32.xlu0 %v580, 15
    %v583 = vpop.permute.xlu0 %582
    %v585 = vmul.f32 %v62, %v583
    %v586 = vmul.f32 %v63, %v583
    %589 = vrot.lane.b32.xlu0 %v585, 113
    %v590 = vpop.permute.xlu0 %589
    %591 = vrot.lane.b32.xlu0 %v586, 113
    %v592 = vpop.permute.xlu0 %591
    %v593 = vsel %vm575, %v590, %v592
    %v595 = vadd.f32 %v560, %v593
    %s596 = scalar_lea.vmem [#allocation7], 128
    %v597 = vld [vmem:[%s596] sm:$0xff]
    %599 = vrot.lane.b32.xlu0 %v597, 16
    %v600 = vpop.permute.xlu0 %599
    %v602 = vmul.f32 %v62, %v600
    %v603 = vmul.f32 %v63, %v600
    %606 = vrot.lane.b32.xlu0 %v602, 112
    %v607 = vpop.permute.xlu0 %606
    %608 = vrot.lane.b32.xlu0 %v603, 112
    %v609 = vpop.permute.xlu0 %608
    %vm610 = vcmask 916480
    %v611 = vsel %vm610, %v607, %v609
    %v613 = vadd.f32 %v578, %v611
    %s614 = scalar_lea.vmem [#allocation7], 528
    %v615 = vld [vmem:[%s614] sm:$0xff]
    %617 = vrot.lane.b32.xlu0 %v615, 16
    %v618 = vpop.permute.xlu0 %617
    %v620 = vmul.f32 %v62, %v618
    %v621 = vmul.f32 %v63, %v618
    %624 = vrot.lane.b32.xlu0 %v620, 112
    %v625 = vpop.permute.xlu0 %624
    %626 = vrot.lane.b32.xlu0 %v621, 112
    %v627 = vpop.permute.xlu0 %626
    %v628 = vsel %vm610, %v625, %v627
    %v630 = vadd.f32 %v595, %v628
    %s631 = scalar_lea.vmem [#allocation7], 136
    %v632 = vld [vmem:[%s631] sm:$0xff]
    %634 = vrot.lane.b32.xlu0 %v632, 17
    %v635 = vpop.permute.xlu0 %634
    %v637 = vmul.f32 %v62, %v635
    %v638 = vmul.f32 %v63, %v635
    %641 = vrot.lane.b32.xlu0 %v637, 111
    %v642 = vpop.permute.xlu0 %641
    %643 = vrot.lane.b32.xlu0 %v638, 111
    %v644 = vpop.permute.xlu0 %643
    %vm645 = vcmask 908288
    %v646 = vsel %vm645, %v642, %v644
    %v648 = vadd.f32 %v613, %v646
    %s649 = scalar_lea.vmem [#allocation7], 536
    %v650 = vld [vmem:[%s649] sm:$0xff]
    %652 = vrot.lane.b32.xlu0 %v650, 17
    %v653 = vpop.permute.xlu0 %652
    %v655 = vmul.f32 %v62, %v653
    %v656 = vmul.f32 %v63, %v653
    %659 = vrot.lane.b32.xlu0 %v655, 111
    %v660 = vpop.permute.xlu0 %659
    %661 = vrot.lane.b32.xlu0 %v656, 111
    %v662 = vpop.permute.xlu0 %661
    %v663 = vsel %vm645, %v660, %v662
    %v665 = vadd.f32 %v630, %v663
    %s666 = scalar_lea.vmem [#allocation7], 144
    %v667 = vld [vmem:[%s666] sm:$0xff]
    %669 = vrot.lane.b32.xlu0 %v667, 18
    %v670 = vpop.permute.xlu0 %669
    %v672 = vmul.f32 %v62, %v670
    %v673 = vmul.f32 %v63, %v670
    %676 = vrot.lane.b32.xlu0 %v672, 110
    %v677 = vpop.permute.xlu0 %676
    %678 = vrot.lane.b32.xlu0 %v673, 110
    %v679 = vpop.permute.xlu0 %678
    %vm680 = vcmask 900096
    %v681 = vsel %vm680, %v677, %v679
    %v683 = vadd.f32 %v648, %v681
    %s684 = scalar_lea.vmem [#allocation7], 544
    %v685 = vld [vmem:[%s684] sm:$0xff]
    %687 = vrot.lane.b32.xlu0 %v685, 18
    %v688 = vpop.permute.xlu0 %687
    %v690 = vmul.f32 %v62, %v688
    %v691 = vmul.f32 %v63, %v688
    %694 = vrot.lane.b32.xlu0 %v690, 110
    %v695 = vpop.permute.xlu0 %694
    %696 = vrot.lane.b32.xlu0 %v691, 110
    %v697 = vpop.permute.xlu0 %696
    %v698 = vsel %vm680, %v695, %v697
    %v700 = vadd.f32 %v665, %v698
    %s701 = scalar_lea.vmem [#allocation7], 152
    %v702 = vld [vmem:[%s701] sm:$0xff]
    %704 = vrot.lane.b32.xlu0 %v702, 19
    %v705 = vpop.permute.xlu0 %704
    %v707 = vmul.f32 %v62, %v705
    %v708 = vmul.f32 %v63, %v705
    %711 = vrot.lane.b32.xlu0 %v707, 109
    %v712 = vpop.permute.xlu0 %711
    %713 = vrot.lane.b32.xlu0 %v708, 109
    %v714 = vpop.permute.xlu0 %713
    %vm715 = vcmask 891904
    %v716 = vsel %vm715, %v712, %v714
    %v718 = vadd.f32 %v683, %v716
    %s719 = scalar_lea.vmem [#allocation7], 552
    %v720 = vld [vmem:[%s719] sm:$0xff]
    %722 = vrot.lane.b32.xlu0 %v720, 19
    %v723 = vpop.permute.xlu0 %722
    %v725 = vmul.f32 %v62, %v723
    %v726 = vmul.f32 %v63, %v723
    %729 = vrot.lane.b32.xlu0 %v725, 109
    %v730 = vpop.permute.xlu0 %729
    %731 = vrot.lane.b32.xlu0 %v726, 109
    %v732 = vpop.permute.xlu0 %731
    %v733 = vsel %vm715, %v730, %v732
    %v735 = vadd.f32 %v700, %v733
    %s736 = scalar_lea.vmem [#allocation7], 160
    %v737 = vld [vmem:[%s736] sm:$0xff]
    %739 = vrot.lane.b32.xlu0 %v737, 20
    %v740 = vpop.permute.xlu0 %739
    %v742 = vmul.f32 %v62, %v740
    %v743 = vmul.f32 %v63, %v740
    %746 = vrot.lane.b32.xlu0 %v742, 108
    %v747 = vpop.permute.xlu0 %746
    %748 = vrot.lane.b32.xlu0 %v743, 108
    %v749 = vpop.permute.xlu0 %748
    %vm750 = vcmask 883712
    %v751 = vsel %vm750, %v747, %v749
    %v753 = vadd.f32 %v718, %v751
    %s754 = scalar_lea.vmem [#allocation7], 560
    %v755 = vld [vmem:[%s754] sm:$0xff]
    %757 = vrot.lane.b32.xlu0 %v755, 20
    %v758 = vpop.permute.xlu0 %757
    %v760 = vmul.f32 %v62, %v758
    %v761 = vmul.f32 %v63, %v758
    %764 = vrot.lane.b32.xlu0 %v760, 108
    %v765 = vpop.permute.xlu0 %764
    %766 = vrot.lane.b32.xlu0 %v761, 108
    %v767 = vpop.permute.xlu0 %766
    %v768 = vsel %vm750, %v765, %v767
    %v770 = vadd.f32 %v735, %v768
    %s771 = scalar_lea.vmem [#allocation7], 168
    %v772 = vld [vmem:[%s771] sm:$0xff]
    %774 = vrot.lane.b32.xlu0 %v772, 21
    %v775 = vpop.permute.xlu0 %774
    %v777 = vmul.f32 %v62, %v775
    %v778 = vmul.f32 %v63, %v775
    %781 = vrot.lane.b32.xlu0 %v777, 107
    %v782 = vpop.permute.xlu0 %781
    %783 = vrot.lane.b32.xlu0 %v778, 107
    %v784 = vpop.permute.xlu0 %783
    %vm785 = vcmask 875520
    %v786 = vsel %vm785, %v782, %v784
    %v788 = vadd.f32 %v753, %v786
    %s789 = scalar_lea.vmem [#allocation7], 568
    %v790 = vld [vmem:[%s789] sm:$0xff]
    %792 = vrot.lane.b32.xlu0 %v790, 21
    %v793 = vpop.permute.xlu0 %792
    %v795 = vmul.f32 %v62, %v793
    %v796 = vmul.f32 %v63, %v793
    %799 = vrot.lane.b32.xlu0 %v795, 107
    %v800 = vpop.permute.xlu0 %799
    %801 = vrot.lane.b32.xlu0 %v796, 107
    %v802 = vpop.permute.xlu0 %801
    %v803 = vsel %vm785, %v800, %v802
    %v805 = vadd.f32 %v770, %v803
    %s806 = scalar_lea.vmem [#allocation7], 176
    %v807 = vld [vmem:[%s806] sm:$0xff]
    %809 = vrot.lane.b32.xlu0 %v807, 22
    %v810 = vpop.permute.xlu0 %809
    %v812 = vmul.f32 %v62, %v810
    %v813 = vmul.f32 %v63, %v810
    %816 = vrot.lane.b32.xlu0 %v812, 106
    %v817 = vpop.permute.xlu0 %816
    %818 = vrot.lane.b32.xlu0 %v813, 106
    %v819 = vpop.permute.xlu0 %818
    %vm820 = vcmask 867328
    %v821 = vsel %vm820, %v817, %v819
    %v823 = vadd.f32 %v788, %v821
    %s824 = scalar_lea.vmem [#allocation7], 576
    %v825 = vld [vmem:[%s824] sm:$0xff]
    %827 = vrot.lane.b32.xlu0 %v825, 22
    %v828 = vpop.permute.xlu0 %827
    %v830 = vmul.f32 %v62, %v828
    %v831 = vmul.f32 %v63, %v828
    %834 = vrot.lane.b32.xlu0 %v830, 106
    %v835 = vpop.permute.xlu0 %834
    %836 = vrot.lane.b32.xlu0 %v831, 106
    %v837 = vpop.permute.xlu0 %836
    %v838 = vsel %vm820, %v835, %v837
    %v840 = vadd.f32 %v805, %v838
    %s841 = scalar_lea.vmem [#allocation7], 184
    %v842 = vld [vmem:[%s841] sm:$0xff]
    %844 = vrot.lane.b32.xlu0 %v842, 23
    %v845 = vpop.permute.xlu0 %844
    %v847 = vmul.f32 %v62, %v845
    %v848 = vmul.f32 %v63, %v845
    %851 = vrot.lane.b32.xlu0 %v847, 105
    %v852 = vpop.permute.xlu0 %851
    %853 = vrot.lane.b32.xlu0 %v848, 105
    %v854 = vpop.permute.xlu0 %853
    %vm855 = vcmask 859136
    %v856 = vsel %vm855, %v852, %v854
    %v858 = vadd.f32 %v823, %v856
    %s859 = scalar_lea.vmem [#allocation7], 584
    %v860 = vld [vmem:[%s859] sm:$0xff]
    %862 = vrot.lane.b32.xlu0 %v860, 23
    %v863 = vpop.permute.xlu0 %862
    %v865 = vmul.f32 %v62, %v863
    %v866 = vmul.f32 %v63, %v863
    %869 = vrot.lane.b32.xlu0 %v865, 105
    %v870 = vpop.permute.xlu0 %869
    %871 = vrot.lane.b32.xlu0 %v866, 105
    %v872 = vpop.permute.xlu0 %871
    %v873 = vsel %vm855, %v870, %v872
    %v875 = vadd.f32 %v840, %v873
    %s876 = scalar_lea.vmem [#allocation7], 192
    %v877 = vld [vmem:[%s876] sm:$0xff]
    %879 = vrot.lane.b32.xlu0 %v877, 24
    %v880 = vpop.permute.xlu0 %879
    %v882 = vmul.f32 %v62, %v880
    %v883 = vmul.f32 %v63, %v880
    %886 = vrot.lane.b32.xlu0 %v882, 104
    %v887 = vpop.permute.xlu0 %886
    %888 = vrot.lane.b32.xlu0 %v883, 104
    %v889 = vpop.permute.xlu0 %888
    %vm890 = vcmask 850944
    %v891 = vsel %vm890, %v887, %v889
    %v893 = vadd.f32 %v858, %v891
    %s894 = scalar_lea.vmem [#allocation7], 592
    %v895 = vld [vmem:[%s894] sm:$0xff]
    %897 = vrot.lane.b32.xlu0 %v895, 24
    %v898 = vpop.permute.xlu0 %897
    %v900 = vmul.f32 %v62, %v898
    %v901 = vmul.f32 %v63, %v898
    %904 = vrot.lane.b32.xlu0 %v900, 104
    %v905 = vpop.permute.xlu0 %904
    %906 = vrot.lane.b32.xlu0 %v901, 104
    %v907 = vpop.permute.xlu0 %906
    %v908 = vsel %vm890, %v905, %v907
    %v910 = vadd.f32 %v875, %v908
    %s911 = scalar_lea.vmem [#allocation7], 200
    %v912 = vld [vmem:[%s911] sm:$0xff]
    %914 = vrot.lane.b32.xlu0 %v912, 25
    %v915 = vpop.permute.xlu0 %914
    %v917 = vmul.f32 %v62, %v915
    %v918 = vmul.f32 %v63, %v915
    %921 = vrot.lane.b32.xlu0 %v917, 103
    %v922 = vpop.permute.xlu0 %921
    %923 = vrot.lane.b32.xlu0 %v918, 103
    %v924 = vpop.permute.xlu0 %923
    %vm925 = vcmask 842752
    %v926 = vsel %vm925, %v922, %v924
    %v928 = vadd.f32 %v893, %v926
    %s929 = scalar_lea.vmem [#allocation7], 600
    %v930 = vld [vmem:[%s929] sm:$0xff]
    %932 = vrot.lane.b32.xlu0 %v930, 25
    %v933 = vpop.permute.xlu0 %932
    %v935 = vmul.f32 %v62, %v933
    %v936 = vmul.f32 %v63, %v933
    %939 = vrot.lane.b32.xlu0 %v935, 103
    %v940 = vpop.permute.xlu0 %939
    %941 = vrot.lane.b32.xlu0 %v936, 103
    %v942 = vpop.permute.xlu0 %941
    %v943 = vsel %vm925, %v940, %v942
    %v945 = vadd.f32 %v910, %v943
    %s946 = scalar_lea.vmem [#allocation7], 208
    %v947 = vld [vmem:[%s946] sm:$0xff]
    %949 = vrot.lane.b32.xlu0 %v947, 26
    %v950 = vpop.permute.xlu0 %949
    %v952 = vmul.f32 %v62, %v950
    %v953 = vmul.f32 %v63, %v950
    %956 = vrot.lane.b32.xlu0 %v952, 102
    %v957 = vpop.permute.xlu0 %956
    %958 = vrot.lane.b32.xlu0 %v953, 102
    %v959 = vpop.permute.xlu0 %958
    %vm960 = vcmask 834560
    %v961 = vsel %vm960, %v957, %v959
    %v963 = vadd.f32 %v928, %v961
    %s964 = scalar_lea.vmem [#allocation7], 608
    %v965 = vld [vmem:[%s964] sm:$0xff]
    %967 = vrot.lane.b32.xlu0 %v965, 26
    %v968 = vpop.permute.xlu0 %967
    %v970 = vmul.f32 %v62, %v968
    %v971 = vmul.f32 %v63, %v968
    %974 = vrot.lane.b32.xlu0 %v970, 102
    %v975 = vpop.permute.xlu0 %974
    %976 = vrot.lane.b32.xlu0 %v971, 102
    %v977 = vpop.permute.xlu0 %976
    %v978 = vsel %vm960, %v975, %v977
    %v980 = vadd.f32 %v945, %v978
    %s981 = scalar_lea.vmem [#allocation7], 216
    %v982 = vld [vmem:[%s981] sm:$0xff]
    %984 = vrot.lane.b32.xlu0 %v982, 27
    %v985 = vpop.permute.xlu0 %984
    %v987 = vmul.f32 %v62, %v985
    %v988 = vmul.f32 %v63, %v985
    %991 = vrot.lane.b32.xlu0 %v987, 101
    %v992 = vpop.permute.xlu0 %991
    %993 = vrot.lane.b32.xlu0 %v988, 101
    %v994 = vpop.permute.xlu0 %993
    %vm995 = vcmask 826368
    %v996 = vsel %vm995, %v992, %v994
    %v998 = vadd.f32 %v963, %v996
    %s999 = scalar_lea.vmem [#allocation7], 616
    %v1000 = vld [vmem:[%s999] sm:$0xff]
    %1002 = vrot.lane.b32.xlu0 %v1000, 27
    %v1003 = vpop.permute.xlu0 %1002
    %v1005 = vmul.f32 %v62, %v1003
    %v1006 = vmul.f32 %v63, %v1003
    %1009 = vrot.lane.b32.xlu0 %v1005, 101
    %v1010 = vpop.permute.xlu0 %1009
    %1011 = vrot.lane.b32.xlu0 %v1006, 101
    %v1012 = vpop.permute.xlu0 %1011
    %v1013 = vsel %vm995, %v1010, %v1012
    %v1015 = vadd.f32 %v980, %v1013
    %s1016 = scalar_lea.vmem [#allocation7], 224
    %v1017 = vld [vmem:[%s1016] sm:$0xff]
    %1019 = vrot.lane.b32.xlu0 %v1017, 28
    %v1020 = vpop.permute.xlu0 %1019
    %v1022 = vmul.f32 %v62, %v1020
    %v1023 = vmul.f32 %v63, %v1020
    %1026 = vrot.lane.b32.xlu0 %v1022, 100
    %v1027 = vpop.permute.xlu0 %1026
    %1028 = vrot.lane.b32.xlu0 %v1023, 100
    %v1029 = vpop.permute.xlu0 %1028
    %vm1030 = vcmask 818176
    %v1031 = vsel %vm1030, %v1027, %v1029
    %v1033 = vadd.f32 %v998, %v1031
    %s1034 = scalar_lea.vmem [#allocation7], 624
    %v1035 = vld [vmem:[%s1034] sm:$0xff]
    %1037 = vrot.lane.b32.xlu0 %v1035, 28
    %v1038 = vpop.permute.xlu0 %1037
    %v1040 = vmul.f32 %v62, %v1038
    %v1041 = vmul.f32 %v63, %v1038
    %1044 = vrot.lane.b32.xlu0 %v1040, 100
    %v1045 = vpop.permute.xlu0 %1044
    %1046 = vrot.lane.b32.xlu0 %v1041, 100
    %v1047 = vpop.permute.xlu0 %1046
    %v1048 = vsel %vm1030, %v1045, %v1047
    %v1050 = vadd.f32 %v1015, %v1048
    %s1051 = scalar_lea.vmem [#allocation7], 232
    %v1052 = vld [vmem:[%s1051] sm:$0xff]
    %1054 = vrot.lane.b32.xlu0 %v1052, 29
    %v1055 = vpop.permute.xlu0 %1054
    %v1057 = vmul.f32 %v62, %v1055
    %v1058 = vmul.f32 %v63, %v1055
    %1061 = vrot.lane.b32.xlu0 %v1057, 99
    %v1062 = vpop.permute.xlu0 %1061
    %1063 = vrot.lane.b32.xlu0 %v1058, 99
    %v1064 = vpop.permute.xlu0 %1063
    %vm1065 = vcmask 809984
    %v1066 = vsel %vm1065, %v1062, %v1064
    %v1068 = vadd.f32 %v1033, %v1066
    %s1069 = scalar_lea.vmem [#allocation7], 632
    %v1070 = vld [vmem:[%s1069] sm:$0xff]
    %1072 = vrot.lane.b32.xlu0 %v1070, 29
    %v1073 = vpop.permute.xlu0 %1072
    %v1075 = vmul.f32 %v62, %v1073
    %v1076 = vmul.f32 %v63, %v1073
    %1079 = vrot.lane.b32.xlu0 %v1075, 99
    %v1080 = vpop.permute.xlu0 %1079
    %1081 = vrot.lane.b32.xlu0 %v1076, 99
    %v1082 = vpop.permute.xlu0 %1081
    %v1083 = vsel %vm1065, %v1080, %v1082
    %v1085 = vadd.f32 %v1050, %v1083
    %s1086 = scalar_lea.vmem [#allocation7], 240
    %v1087 = vld [vmem:[%s1086] sm:$0xff]
    %1089 = vrot.lane.b32.xlu0 %v1087, 30
    %v1090 = vpop.permute.xlu0 %1089
    %v1092 = vmul.f32 %v62, %v1090
    %v1093 = vmul.f32 %v63, %v1090
    %1096 = vrot.lane.b32.xlu0 %v1092, 98
    %v1097 = vpop.permute.xlu0 %1096
    %1098 = vrot.lane.b32.xlu0 %v1093, 98
    %v1099 = vpop.permute.xlu0 %1098
    %vm1100 = vcmask 801792
    %v1101 = vsel %vm1100, %v1097, %v1099
    %v1103 = vadd.f32 %v1068, %v1101
    %s1104 = scalar_lea.vmem [#allocation7], 640
    %v1105 = vld [vmem:[%s1104] sm:$0xff]
    %1107 = vrot.lane.b32.xlu0 %v1105, 30
    %v1108 = vpop.permute.xlu0 %1107
    %v1110 = vmul.f32 %v62, %v1108
    %v1111 = vmul.f32 %v63, %v1108
    %1114 = vrot.lane.b32.xlu0 %v1110, 98
    %v1115 = vpop.permute.xlu0 %1114
    %1116 = vrot.lane.b32.xlu0 %v1111, 98
    %v1117 = vpop.permute.xlu0 %1116
    %v1118 = vsel %vm1100, %v1115, %v1117
    %v1120 = vadd.f32 %v1085, %v1118
    %s1121 = scalar_lea.vmem [#allocation7], 248
    %v1122 = vld [vmem:[%s1121] sm:$0xff]
    %1124 = vrot.lane.b32.xlu0 %v1122, 31
    %v1125 = vpop.permute.xlu0 %1124
    %v1127 = vmul.f32 %v62, %v1125
    %v1128 = vmul.f32 %v63, %v1125
    %1131 = vrot.lane.b32.xlu0 %v1127, 97
    %v1132 = vpop.permute.xlu0 %1131
    %1133 = vrot.lane.b32.xlu0 %v1128, 97
    %v1134 = vpop.permute.xlu0 %1133
    %vm1135 = vcmask 793600
    %v1136 = vsel %vm1135, %v1132, %v1134
    %v1138 = vadd.f32 %v1103, %v1136
    %s1139 = scalar_lea.vmem [#allocation7], 648
    %v1140 = vld [vmem:[%s1139] sm:$0xff]
    %1142 = vrot.lane.b32.xlu0 %v1140, 31
    %v1143 = vpop.permute.xlu0 %1142
    %v1145 = vmul.f32 %v62, %v1143
    %v1146 = vmul.f32 %v63, %v1143
    %1149 = vrot.lane.b32.xlu0 %v1145, 97
    %v1150 = vpop.permute.xlu0 %1149
    %1151 = vrot.lane.b32.xlu0 %v1146, 97
    %v1152 = vpop.permute.xlu0 %1151
    %v1153 = vsel %vm1135, %v1150, %v1152
    %v1155 = vadd.f32 %v1120, %v1153
    %s1156 = scalar_lea.vmem [#allocation7], 256
    %v1157 = vld [vmem:[%s1156] sm:$0xff]
    %1159 = vrot.lane.b32.xlu0 %v1157, 32
    %v1160 = vpop.permute.xlu0 %1159
    %v1162 = vmul.f32 %v62, %v1160
    %v1163 = vmul.f32 %v63, %v1160
    %1166 = vrot.lane.b32.xlu0 %v1162, 96
    %v1167 = vpop.permute.xlu0 %1166
    %1168 = vrot.lane.b32.xlu0 %v1163, 96
    %v1169 = vpop.permute.xlu0 %1168
    %vm1170 = vcmask 785408
    %v1171 = vsel %vm1170, %v1167, %v1169
    %v1173 = vadd.f32 %v1138, %v1171
    %s1174 = scalar_lea.vmem [#allocation7], 656
    %v1175 = vld [vmem:[%s1174] sm:$0xff]
    %1177 = vrot.lane.b32.xlu0 %v1175, 32
    %v1178 = vpop.permute.xlu0 %1177
    %v1180 = vmul.f32 %v62, %v1178
    %v1181 = vmul.f32 %v63, %v1178
    %1184 = vrot.lane.b32.xlu0 %v1180, 96
    %v1185 = vpop.permute.xlu0 %1184
    %1186 = vrot.lane.b32.xlu0 %v1181, 96
    %v1187 = vpop.permute.xlu0 %1186
    %v1188 = vsel %vm1170, %v1185, %v1187
    %v1190 = vadd.f32 %v1155, %v1188
    %s1191 = scalar_lea.vmem [#allocation7], 264
    %v1192 = vld [vmem:[%s1191] sm:$0xff]
    %1194 = vrot.lane.b32.xlu0 %v1192, 33
    %v1195 = vpop.permute.xlu0 %1194
    %v1197 = vmul.f32 %v62, %v1195
    %v1198 = vmul.f32 %v63, %v1195
    %1201 = vrot.lane.b32.xlu0 %v1197, 95
    %v1202 = vpop.permute.xlu0 %1201
    %1203 = vrot.lane.b32.xlu0 %v1198, 95
    %v1204 = vpop.permute.xlu0 %1203
    %vm1205 = vcmask 777216
    %v1206 = vsel %vm1205, %v1202, %v1204
    %v1208 = vadd.f32 %v1173, %v1206
    %s1209 = scalar_lea.vmem [#allocation7], 664
    %v1210 = vld [vmem:[%s1209] sm:$0xff]
    %1212 = vrot.lane.b32.xlu0 %v1210, 33
    %v1213 = vpop.permute.xlu0 %1212
    %v1215 = vmul.f32 %v62, %v1213
    %v1216 = vmul.f32 %v63, %v1213
    %1219 = vrot.lane.b32.xlu0 %v1215, 95
    %v1220 = vpop.permute.xlu0 %1219
    %1221 = vrot.lane.b32.xlu0 %v1216, 95
    %v1222 = vpop.permute.xlu0 %1221
    %v1223 = vsel %vm1205, %v1220, %v1222
    %v1225 = vadd.f32 %v1190, %v1223
    %s1226 = scalar_lea.vmem [#allocation7], 272
    %v1227 = vld [vmem:[%s1226] sm:$0xff]
    %1229 = vrot.lane.b32.xlu0 %v1227, 34
    %v1230 = vpop.permute.xlu0 %1229
    %v1232 = vmul.f32 %v62, %v1230
    %v1233 = vmul.f32 %v63, %v1230
    %1236 = vrot.lane.b32.xlu0 %v1232, 94
    %v1237 = vpop.permute.xlu0 %1236
    %1238 = vrot.lane.b32.xlu0 %v1233, 94
    %v1239 = vpop.permute.xlu0 %1238
    %vm1240 = vcmask 769024
    %v1241 = vsel %vm1240, %v1237, %v1239
    %v1243 = vadd.f32 %v1208, %v1241
    %s1244 = scalar_lea.vmem [#allocation7], 672
    %v1245 = vld [vmem:[%s1244] sm:$0xff]
    %1247 = vrot.lane.b32.xlu0 %v1245, 34
    %v1248 = vpop.permute.xlu0 %1247
    %v1250 = vmul.f32 %v62, %v1248
    %v1251 = vmul.f32 %v63, %v1248
    %1254 = vrot.lane.b32.xlu0 %v1250, 94
    %v1255 = vpop.permute.xlu0 %1254
    %1256 = vrot.lane.b32.xlu0 %v1251, 94
    %v1257 = vpop.permute.xlu0 %1256
    %v1258 = vsel %vm1240, %v1255, %v1257
    %v1260 = vadd.f32 %v1225, %v1258
    %s1261 = scalar_lea.vmem [#allocation7], 280
    %v1262 = vld [vmem:[%s1261] sm:$0xff]
    %1264 = vrot.lane.b32.xlu0 %v1262, 35
    %v1265 = vpop.permute.xlu0 %1264
    %v1267 = vmul.f32 %v62, %v1265
    %v1268 = vmul.f32 %v63, %v1265
    %1271 = vrot.lane.b32.xlu0 %v1267, 93
    %v1272 = vpop.permute.xlu0 %1271
    %1273 = vrot.lane.b32.xlu0 %v1268, 93
    %v1274 = vpop.permute.xlu0 %1273
    %vm1275 = vcmask 760832
    %v1276 = vsel %vm1275, %v1272, %v1274
    %v1278 = vadd.f32 %v1243, %v1276
    %s1279 = scalar_lea.vmem [#allocation7], 680
    %v1280 = vld [vmem:[%s1279] sm:$0xff]
    %1282 = vrot.lane.b32.xlu0 %v1280, 35
    %v1283 = vpop.permute.xlu0 %1282
    %v1285 = vmul.f32 %v62, %v1283
    %v1286 = vmul.f32 %v63, %v1283
    %1289 = vrot.lane.b32.xlu0 %v1285, 93
    %v1290 = vpop.permute.xlu0 %1289
    %1291 = vrot.lane.b32.xlu0 %v1286, 93
    %v1292 = vpop.permute.xlu0 %1291
    %v1293 = vsel %vm1275, %v1290, %v1292
    %v1295 = vadd.f32 %v1260, %v1293
    %s1296 = scalar_lea.vmem [#allocation7], 288
    %v1297 = vld [vmem:[%s1296] sm:$0xff]
    %1299 = vrot.lane.b32.xlu0 %v1297, 36
    %v1300 = vpop.permute.xlu0 %1299
    %v1302 = vmul.f32 %v62, %v1300
    %v1303 = vmul.f32 %v63, %v1300
    %1306 = vrot.lane.b32.xlu0 %v1302, 92
    %v1307 = vpop.permute.xlu0 %1306
    %1308 = vrot.lane.b32.xlu0 %v1303, 92
    %v1309 = vpop.permute.xlu0 %1308
    %vm1310 = vcmask 752640
    %v1311 = vsel %vm1310, %v1307, %v1309
    %v1313 = vadd.f32 %v1278, %v1311
    %s1314 = scalar_lea.vmem [#allocation7], 688
    %v1315 = vld [vmem:[%s1314] sm:$0xff]
    %1317 = vrot.lane.b32.xlu0 %v1315, 36
    %v1318 = vpop.permute.xlu0 %1317
    %v1320 = vmul.f32 %v62, %v1318
    %v1321 = vmul.f32 %v63, %v1318
    %1324 = vrot.lane.b32.xlu0 %v1320, 92
    %v1325 = vpop.permute.xlu0 %1324
    %1326 = vrot.lane.b32.xlu0 %v1321, 92
    %v1327 = vpop.permute.xlu0 %1326
    %v1328 = vsel %vm1310, %v1325, %v1327
    %v1330 = vadd.f32 %v1295, %v1328
    %s1331 = scalar_lea.vmem [#allocation7], 296
    %v1332 = vld [vmem:[%s1331] sm:$0xff]
    %1334 = vrot.lane.b32.xlu0 %v1332, 37
    %v1335 = vpop.permute.xlu0 %1334
    %v1337 = vmul.f32 %v62, %v1335
    %v1338 = vmul.f32 %v63, %v1335
    %1341 = vrot.lane.b32.xlu0 %v1337, 91
    %v1342 = vpop.permute.xlu0 %1341
    %1343 = vrot.lane.b32.xlu0 %v1338, 91
    %v1344 = vpop.permute.xlu0 %1343
    %vm1345 = vcmask 744448
    %v1346 = vsel %vm1345, %v1342, %v1344
    %v1348 = vadd.f32 %v1313, %v1346
    %s1349 = scalar_lea.vmem [#allocation7], 696
    %v1350 = vld [vmem:[%s1349] sm:$0xff]
    %1352 = vrot.lane.b32.xlu0 %v1350, 37
    %v1353 = vpop.permute.xlu0 %1352
    %v1355 = vmul.f32 %v62, %v1353
    %v1356 = vmul.f32 %v63, %v1353
    %1359 = vrot.lane.b32.xlu0 %v1355, 91
    %v1360 = vpop.permute.xlu0 %1359
    %1361 = vrot.lane.b32.xlu0 %v1356, 91
    %v1362 = vpop.permute.xlu0 %1361
    %v1363 = vsel %vm1345, %v1360, %v1362
    %v1365 = vadd.f32 %v1330, %v1363
    %s1366 = scalar_lea.vmem [#allocation7], 304
    %v1367 = vld [vmem:[%s1366] sm:$0xff]
    %1369 = vrot.lane.b32.xlu0 %v1367, 38
    %v1370 = vpop.permute.xlu0 %1369
    %v1372 = vmul.f32 %v62, %v1370
    %v1373 = vmul.f32 %v63, %v1370
    %1376 = vrot.lane.b32.xlu0 %v1372, 90
    %v1377 = vpop.permute.xlu0 %1376
    %1378 = vrot.lane.b32.xlu0 %v1373, 90
    %v1379 = vpop.permute.xlu0 %1378
    %vm1380 = vcmask 736256
    %v1381 = vsel %vm1380, %v1377, %v1379
    %v1383 = vadd.f32 %v1348, %v1381
    %s1384 = scalar_lea.vmem [#allocation7], 704
    %v1385 = vld [vmem:[%s1384] sm:$0xff]
    %1387 = vrot.lane.b32.xlu0 %v1385, 38
    %v1388 = vpop.permute.xlu0 %1387
    %v1390 = vmul.f32 %v62, %v1388
    %v1391 = vmul.f32 %v63, %v1388
    %1394 = vrot.lane.b32.xlu0 %v1390, 90
    %v1395 = vpop.permute.xlu0 %1394
    %1396 = vrot.lane.b32.xlu0 %v1391, 90
    %v1397 = vpop.permute.xlu0 %1396
    %v1398 = vsel %vm1380, %v1395, %v1397
    %v1400 = vadd.f32 %v1365, %v1398
    %s1401 = scalar_lea.vmem [#allocation7], 312
    %v1402 = vld [vmem:[%s1401] sm:$0xff]
    %1404 = vrot.lane.b32.xlu0 %v1402, 39
    %v1405 = vpop.permute.xlu0 %1404
    %v1407 = vmul.f32 %v62, %v1405
    %v1408 = vmul.f32 %v63, %v1405
    %1411 = vrot.lane.b32.xlu0 %v1407, 89
    %v1412 = vpop.permute.xlu0 %1411
    %1413 = vrot.lane.b32.xlu0 %v1408, 89
    %v1414 = vpop.permute.xlu0 %1413
    %vm1415 = vcmask 728064
    %v1416 = vsel %vm1415, %v1412, %v1414
    %v1418 = vadd.f32 %v1383, %v1416
    %s1419 = scalar_lea.vmem [#allocation7], 712
    %v1420 = vld [vmem:[%s1419] sm:$0xff]
    %1422 = vrot.lane.b32.xlu0 %v1420, 39
    %v1423 = vpop.permute.xlu0 %1422
    %v1425 = vmul.f32 %v62, %v1423
    %v1426 = vmul.f32 %v63, %v1423
    %1429 = vrot.lane.b32.xlu0 %v1425, 89
    %v1430 = vpop.permute.xlu0 %1429
    %1431 = vrot.lane.b32.xlu0 %v1426, 89
    %v1432 = vpop.permute.xlu0 %1431
    %v1433 = vsel %vm1415, %v1430, %v1432
    %v1435 = vadd.f32 %v1400, %v1433
    %s1436 = scalar_lea.vmem [#allocation7], 320
    %v1437 = vld [vmem:[%s1436] sm:$0xff]
    %1439 = vrot.lane.b32.xlu0 %v1437, 40
    %v1440 = vpop.permute.xlu0 %1439
    %v1442 = vmul.f32 %v62, %v1440
    %v1443 = vmul.f32 %v63, %v1440
    %1446 = vrot.lane.b32.xlu0 %v1442, 88
    %v1447 = vpop.permute.xlu0 %1446
    %1448 = vrot.lane.b32.xlu0 %v1443, 88
    %v1449 = vpop.permute.xlu0 %1448
    %vm1450 = vcmask 719872
    %v1451 = vsel %vm1450, %v1447, %v1449
    %v1453 = vadd.f32 %v1418, %v1451
    %s1454 = scalar_lea.vmem [#allocation7], 720
    %v1455 = vld [vmem:[%s1454] sm:$0xff]
    %1457 = vrot.lane.b32.xlu0 %v1455, 40
    %v1458 = vpop.permute.xlu0 %1457
    %v1460 = vmul.f32 %v62, %v1458
    %v1461 = vmul.f32 %v63, %v1458
    %1464 = vrot.lane.b32.xlu0 %v1460, 88
    %v1465 = vpop.permute.xlu0 %1464
    %1466 = vrot.lane.b32.xlu0 %v1461, 88
    %v1467 = vpop.permute.xlu0 %1466
    %v1468 = vsel %vm1450, %v1465, %v1467
    %v1470 = vadd.f32 %v1435, %v1468
    %s1471 = scalar_lea.vmem [#allocation7], 328
    %v1472 = vld [vmem:[%s1471] sm:$0xff]
    %1474 = vrot.lane.b32.xlu0 %v1472, 41
    %v1475 = vpop.permute.xlu0 %1474
    %v1477 = vmul.f32 %v62, %v1475
    %v1478 = vmul.f32 %v63, %v1475
    %1481 = vrot.lane.b32.xlu0 %v1477, 87
    %v1482 = vpop.permute.xlu0 %1481
    %1483 = vrot.lane.b32.xlu0 %v1478, 87
    %v1484 = vpop.permute.xlu0 %1483
    %vm1485 = vcmask 711680
    %v1486 = vsel %vm1485, %v1482, %v1484
    %v1488 = vadd.f32 %v1453, %v1486
    %s1489 = scalar_lea.vmem [#allocation7], 728
    %v1490 = vld [vmem:[%s1489] sm:$0xff]
    %1492 = vrot.lane.b32.xlu0 %v1490, 41
    %v1493 = vpop.permute.xlu0 %1492
    %v1495 = vmul.f32 %v62, %v1493
    %v1496 = vmul.f32 %v63, %v1493
    %1499 = vrot.lane.b32.xlu0 %v1495, 87
    %v1500 = vpop.permute.xlu0 %1499
    %1501 = vrot.lane.b32.xlu0 %v1496, 87
    %v1502 = vpop.permute.xlu0 %1501
    %v1503 = vsel %vm1485, %v1500, %v1502
    %v1505 = vadd.f32 %v1470, %v1503
    %s1506 = scalar_lea.vmem [#allocation7], 336
    %v1507 = vld [vmem:[%s1506] sm:$0xff]
    %1509 = vrot.lane.b32.xlu0 %v1507, 42
    %v1510 = vpop.permute.xlu0 %1509
    %v1512 = vmul.f32 %v62, %v1510
    %v1513 = vmul.f32 %v63, %v1510
    %1516 = vrot.lane.b32.xlu0 %v1512, 86
    %v1517 = vpop.permute.xlu0 %1516
    %1518 = vrot.lane.b32.xlu0 %v1513, 86
    %v1519 = vpop.permute.xlu0 %1518
    %vm1520 = vcmask 703488
    %v1521 = vsel %vm1520, %v1517, %v1519
    %v1523 = vadd.f32 %v1488, %v1521
    %s1524 = scalar_lea.vmem [#allocation7], 736
    %v1525 = vld [vmem:[%s1524] sm:$0xff]
    %1527 = vrot.lane.b32.xlu0 %v1525, 42
    %v1528 = vpop.permute.xlu0 %1527
    %v1530 = vmul.f32 %v62, %v1528
    %v1531 = vmul.f32 %v63, %v1528
    %1534 = vrot.lane.b32.xlu0 %v1530, 86
    %v1535 = vpop.permute.xlu0 %1534
    %1536 = vrot.lane.b32.xlu0 %v1531, 86
    %v1537 = vpop.permute.xlu0 %1536
    %v1538 = vsel %vm1520, %v1535, %v1537
    %v1540 = vadd.f32 %v1505, %v1538
    %s1541 = scalar_lea.vmem [#allocation7], 344
    %v1542 = vld [vmem:[%s1541] sm:$0xff]
    %1544 = vrot.lane.b32.xlu0 %v1542, 43
    %v1545 = vpop.permute.xlu0 %1544
    %v1547 = vmul.f32 %v62, %v1545
    %v1548 = vmul.f32 %v63, %v1545
    %1551 = vrot.lane.b32.xlu0 %v1547, 85
    %v1552 = vpop.permute.xlu0 %1551
    %1553 = vrot.lane.b32.xlu0 %v1548, 85
    %v1554 = vpop.permute.xlu0 %1553
    %vm1555 = vcmask 695296
    %v1556 = vsel %vm1555, %v1552, %v1554
    %v1558 = vadd.f32 %v1523, %v1556
    %s1559 = scalar_lea.vmem [#allocation7], 744
    %v1560 = vld [vmem:[%s1559] sm:$0xff]
    %1562 = vrot.lane.b32.xlu0 %v1560, 43
    %v1563 = vpop.permute.xlu0 %1562
    %v1565 = vmul.f32 %v62, %v1563
    %v1566 = vmul.f32 %v63, %v1563
    %1569 = vrot.lane.b32.xlu0 %v1565, 85
    %v1570 = vpop.permute.xlu0 %1569
    %1571 = vrot.lane.b32.xlu0 %v1566, 85
    %v1572 = vpop.permute.xlu0 %1571
    %v1573 = vsel %vm1555, %v1570, %v1572
    %v1575 = vadd.f32 %v1540, %v1573
    %s1576 = scalar_lea.vmem [#allocation7], 352
    %v1577 = vld [vmem:[%s1576] sm:$0xff]
    %1579 = vrot.lane.b32.xlu0 %v1577, 44
    %v1580 = vpop.permute.xlu0 %1579
    %v1582 = vmul.f32 %v62, %v1580
    %v1583 = vmul.f32 %v63, %v1580
    %1586 = vrot.lane.b32.xlu0 %v1582, 84
    %v1587 = vpop.permute.xlu0 %1586
    %1588 = vrot.lane.b32.xlu0 %v1583, 84
    %v1589 = vpop.permute.xlu0 %1588
    %vm1590 = vcmask 687104
    %v1591 = vsel %vm1590, %v1587, %v1589
    %v1593 = vadd.f32 %v1558, %v1591
    %s1594 = scalar_lea.vmem [#allocation7], 752
    %v1595 = vld [vmem:[%s1594] sm:$0xff]
    %1597 = vrot.lane.b32.xlu0 %v1595, 44
    %v1598 = vpop.permute.xlu0 %1597
    %v1600 = vmul.f32 %v62, %v1598
    %v1601 = vmul.f32 %v63, %v1598
    %1604 = vrot.lane.b32.xlu0 %v1600, 84
    %v1605 = vpop.permute.xlu0 %1604
    %1606 = vrot.lane.b32.xlu0 %v1601, 84
    %v1607 = vpop.permute.xlu0 %1606
    %v1608 = vsel %vm1590, %v1605, %v1607
    %v1610 = vadd.f32 %v1575, %v1608
    %s1611 = scalar_lea.vmem [#allocation7], 360
    %v1612 = vld [vmem:[%s1611] sm:$0xff]
    %1614 = vrot.lane.b32.xlu0 %v1612, 45
    %v1615 = vpop.permute.xlu0 %1614
    %v1617 = vmul.f32 %v62, %v1615
    %v1618 = vmul.f32 %v63, %v1615
    %1621 = vrot.lane.b32.xlu0 %v1617, 83
    %v1622 = vpop.permute.xlu0 %1621
    %1623 = vrot.lane.b32.xlu0 %v1618, 83
    %v1624 = vpop.permute.xlu0 %1623
    %vm1625 = vcmask 678912
    %v1626 = vsel %vm1625, %v1622, %v1624
    %v1628 = vadd.f32 %v1593, %v1626
    %s1629 = scalar_lea.vmem [#allocation7], 760
    %v1630 = vld [vmem:[%s1629] sm:$0xff]
    %1632 = vrot.lane.b32.xlu0 %v1630, 45
    %v1633 = vpop.permute.xlu0 %1632
    %v1635 = vmul.f32 %v62, %v1633
    %v1636 = vmul.f32 %v63, %v1633
    %1639 = vrot.lane.b32.xlu0 %v1635, 83
    %v1640 = vpop.permute.xlu0 %1639
    %1641 = vrot.lane.b32.xlu0 %v1636, 83
    %v1642 = vpop.permute.xlu0 %1641
    %v1643 = vsel %vm1625, %v1640, %v1642
    %v1645 = vadd.f32 %v1610, %v1643
    %s1646 = scalar_lea.vmem [#allocation7], 368
    %v1647 = vld [vmem:[%s1646] sm:$0xff]
    %1649 = vrot.lane.b32.xlu0 %v1647, 46
    %v1650 = vpop.permute.xlu0 %1649
    %v1652 = vmul.f32 %v62, %v1650
    %v1653 = vmul.f32 %v63, %v1650
    %1656 = vrot.lane.b32.xlu0 %v1652, 82
    %v1657 = vpop.permute.xlu0 %1656
    %1658 = vrot.lane.b32.xlu0 %v1653, 82
    %v1659 = vpop.permute.xlu0 %1658
    %vm1660 = vcmask 670720
    %v1661 = vsel %vm1660, %v1657, %v1659
    %v1663 = vadd.f32 %v1628, %v1661
    %s1664 = scalar_lea.vmem [#allocation7], 768
    %v1665 = vld [vmem:[%s1664] sm:$0xff]
    %1667 = vrot.lane.b32.xlu0 %v1665, 46
    %v1668 = vpop.permute.xlu0 %1667
    %v1670 = vmul.f32 %v62, %v1668
    %v1671 = vmul.f32 %v63, %v1668
    %1674 = vrot.lane.b32.xlu0 %v1670, 82
    %v1675 = vpop.permute.xlu0 %1674
    %1676 = vrot.lane.b32.xlu0 %v1671, 82
    %v1677 = vpop.permute.xlu0 %1676
    %v1678 = vsel %vm1660, %v1675, %v1677
    %v1680 = vadd.f32 %v1645, %v1678
    %s1681 = scalar_lea.vmem [#allocation7], 376
    %v1682 = vld [vmem:[%s1681] sm:$0xff]
    %1684 = vrot.lane.b32.xlu0 %v1682, 47
    %v1685 = vpop.permute.xlu0 %1684
    %v1687 = vmul.f32 %v62, %v1685
    %v1688 = vmul.f32 %v63, %v1685
    %1691 = vrot.lane.b32.xlu0 %v1687, 81
    %v1692 = vpop.permute.xlu0 %1691
    %1693 = vrot.lane.b32.xlu0 %v1688, 81
    %v1694 = vpop.permute.xlu0 %1693
    %vm1695 = vcmask 662528
    %v1696 = vsel %vm1695, %v1692, %v1694
    %v1698 = vadd.f32 %v1663, %v1696
    %s1699 = scalar_lea.vmem [#allocation7], 776
    %v1700 = vld [vmem:[%s1699] sm:$0xff]
    %1702 = vrot.lane.b32.xlu0 %v1700, 47
    %v1703 = vpop.permute.xlu0 %1702
    %v1705 = vmul.f32 %v62, %v1703
    %v1706 = vmul.f32 %v63, %v1703
    %1709 = vrot.lane.b32.xlu0 %v1705, 81
    %v1710 = vpop.permute.xlu0 %1709
    %1711 = vrot.lane.b32.xlu0 %v1706, 81
    %v1712 = vpop.permute.xlu0 %1711
    %v1713 = vsel %vm1695, %v1710, %v1712
    %v1715 = vadd.f32 %v1680, %v1713
    %s1716 = scalar_lea.vmem [#allocation7], 384
    %v1717 = vld [vmem:[%s1716] sm:$0xff]
    %1719 = vrot.lane.b32.xlu0 %v1717, 48
    %v1720 = vpop.permute.xlu0 %1719
    %v1722 = vmul.f32 %v62, %v1720
    %v1723 = vmul.f32 %v63, %v1720
    %1726 = vrot.lane.b32.xlu0 %v1722, 80
    %v1727 = vpop.permute.xlu0 %1726
    %1728 = vrot.lane.b32.xlu0 %v1723, 80
    %v1729 = vpop.permute.xlu0 %1728
    %vm1730 = vcmask 654336
    %v1731 = vsel %vm1730, %v1727, %v1729
    %v1733 = vadd.f32 %v1698, %v1731
    %s1734 = scalar_lea.vmem [#allocation7], 784
    %v1735 = vld [vmem:[%s1734] sm:$0xff]
    %1737 = vrot.lane.b32.xlu0 %v1735, 48
    %v1738 = vpop.permute.xlu0 %1737
    %v1740 = vmul.f32 %v62, %v1738
    %v1741 = vmul.f32 %v63, %v1738
    %1744 = vrot.lane.b32.xlu0 %v1740, 80
    %v1745 = vpop.permute.xlu0 %1744
    %1746 = vrot.lane.b32.xlu0 %v1741, 80
    %v1747 = vpop.permute.xlu0 %1746
    %v1748 = vsel %vm1730, %v1745, %v1747
    %v1750 = vadd.f32 %v1715, %v1748
    %s1751 = scalar_lea.vmem [#allocation7], 392
    %v1752 = vld [vmem:[%s1751] sm:$0xff]
    %1754 = vrot.lane.b32.xlu0 %v1752, 49
    %v1755 = vpop.permute.xlu0 %1754
    %v1757 = vmul.f32 %v62, %v1755
    %v1758 = vmul.f32 %v63, %v1755
    %1761 = vrot.lane.b32.xlu0 %v1757, 79
    %v1762 = vpop.permute.xlu0 %1761
    %1763 = vrot.lane.b32.xlu0 %v1758, 79
    %v1764 = vpop.permute.xlu0 %1763
    %vm1765 = vcmask 646144
    %v1766 = vsel %vm1765, %v1762, %v1764
    %v1768 = vadd.f32 %v1733, %v1766
    %s1769 = scalar_lea.vmem [#allocation7], 792
    %v1770 = vld [vmem:[%s1769] sm:$0xff]
    %1772 = vrot.lane.b32.xlu0 %v1770, 49
    %v1773 = vpop.permute.xlu0 %1772
    %v1775 = vmul.f32 %v62, %v1773
    %v1776 = vmul.f32 %v63, %v1773
    %1779 = vrot.lane.b32.xlu0 %v1775, 79
    %v1780 = vpop.permute.xlu0 %1779
    %1781 = vrot.lane.b32.xlu0 %v1776, 79
    %v1782 = vpop.permute.xlu0 %1781
    %v1783 = vsel %vm1765, %v1780, %v1782
    %v1785 = vadd.f32 %v1750, %v1783
    %v1786 = vmax.f32 %v1768, 0.0
    %1787 = vst [vmem:[#allocation8] sm:$0xff] %v1786
    %v1788 = vmax.f32 %v1785, 0.0
    %s1789 = scalar_lea.vmem [#allocation8], 8
    %1790 = vst [vmem:[%s1789] sm:$0xff] %v1788
    // Predicated region
    $region26: #{tpu_custom_call.1} parent=1 // pred_check
      _
    $region27: #{tpu_custom_call.1} parent=1 // pred_check_branch
      %1792 = sbr.rel (0) target = $region29
    $region28: #{tpu_custom_call.1} parent=1 // pred_region
      %1794 = vsyncadd [#allocation4], 0
      %s1795 = sshll.u32 [#allocation8], 4
      %s1796 = int_to_ptr.vmem [resolvable:$true] %s1795
      %s1797 = sshll.u32 %s3, 4
      %s1798 = int_to_ptr.hbm [resolvable:$true] %s1797
      %1803 = dma.vmem_to_hbm [thread:$0]  %s1796, 256, %s1798, [#allocation4], 128, 128, 8
    $region29: #{tpu_custom_call.1} parent=1 // pred_fallthru
      _
    // Predicated region
    $region30: #{tpu_custom_call.1} parent=1 // pred_check
      _
    $region31: #{tpu_custom_call.1} parent=1 // pred_check_branch
      %1805 = sbr.rel (0) target = $region33
    $region32: #{tpu_custom_call.1} parent=1 // pred_region
      %1807 = dma.done [#allocation4], 256
    $region33: #{tpu_custom_call.1} parent=1 // pred_fallthru
      _
    %1808 = vsyncpa [#allocation3], 1
    %1809 = vsyncpa [#allocation6], 1
    %1810 = vsyncpa [#allocation4], 1

</llo_original>
